<compile_context>
chip_gen: v7x
topology: tpu7x:2x2x1
jax: 0.10.0
libtpu: 0.0.40
codegen_flags: <defaults>
</compile_context>

<pallas_src>
import math
from functools import partial

import jax
import jax.numpy as jnp
from jax import lax
from jax.experimental import pallas as pl
from jax.experimental.pallas import tpu as pltpu  # noqa: F401  (TPU backend)

# ----------------------------- tiny-BERT config ------------------------------
VOCAB = 64
TYPE_VOCAB = 2
MAX_POS = 16
HIDDEN = 32
HEADS = 2
HEAD_DIM = HIDDEN // HEADS
LAYERS = 2
INTER = 64
NUM_LABELS = 2
LN_EPS = 1e-12

BATCH = 2
SEQ = 8

# embedding slab rows: [word(64); pos(16); type(2); zero-pad]
EMB_ROWS = VOCAB + MAX_POS + TYPE_VOCAB            # 82
EMB_ROWS_PAD = ((EMB_ROWS + 7) // 8) * 8           # 88 (sublane aligned)

# vec-slab row layout (all biases / LN vectors, width-padded to 3*HIDDEN)
VROW_PER_LAYER = 8
V_BQKV, V_BO, V_LN1G, V_LN1B, V_BI, V_BO2, V_LN2G, V_LN2B = range(8)
V_EMB_G = LAYERS * VROW_PER_LAYER + 0
V_EMB_B = LAYERS * VROW_PER_LAYER + 1
V_POOL_B = LAYERS * VROW_PER_LAYER + 2
V_CLS_B = LAYERS * VROW_PER_LAYER + 3
VEC_ROWS = LAYERS * VROW_PER_LAYER + 4
VEC_W = 3 * HIDDEN                                 # 96 (widest vector = bqkv)

# weight-slab column layout (all matrices stored with HIDDEN rows; wo2 stored
# transposed so every per-layer matrix fits the same (H, 256) slab slice)
WC_QKV = 0                                         # (H, 3H)
WC_O = 3 * HIDDEN                                  # (H, H)
WC_I = 4 * HIDDEN                                  # (H, INTER)
WC_O2T = 4 * HIDDEN + INTER                        # (H, INTER) == wo2.T
W_COLS = 4 * HIDDEN + 2 * INTER                    # 256


# --------------------------- in-kernel math helpers ---------------------------
def _gelu(x):
    # TODO(synk): HuggingFace Bert default is exact erf-GELU; tanh approximation
    # used here for guaranteed Mosaic lowering (tiny numerical deviation).
    c = math.sqrt(2.0 / math.pi)
    return 0.5 * x * (1.0 + jnp.tanh(c * (x + 0.044715 * x * x * x)))


def _layernorm(x, g, b, eps=LN_EPS):
    mu = jnp.mean(x, axis=-1, keepdims=True)
    xc = x - mu
    var = jnp.mean(xc * xc, axis=-1, keepdims=True)
    return xc * lax.rsqrt(var + eps) * g + b


def _div_const(x, d):
    # integer divide by a static positive int; use shifts for powers of two
    if d & (d - 1) == 0:
        return x >> (d.bit_length() - 1)
    return x // d


def _mod_const(x, d):
    if d & (d - 1) == 0:
        return x & (d - 1)
    return x % d


# ------------------------------ fused BERT kernel ------------------------------
def _bert_fused_kernel(
    # tiny int inputs
    ids_ref, type_ref, amask_ref, labels_ref,
    # packed weight slabs
    emb_ref, w_ref, vec_ref,
    # outputs
    loss_ref, logits_ref,
    *, batch, seq, heads, head_dim, layers,
):
    hidden = heads * head_dim
    bs = batch * seq
    n = heads * bs                       # stacked (head, batch, seq) rows
    scale = 1.0 / math.sqrt(head_dim)

    vec = vec_ref[...]                   # (VEC_ROWS, VEC_W): all biases / LN params

    def vrow(r, width):
        return vec[r:r + 1, 0:width]     # (1, width) broadcast row

    # ---- embeddings: word+pos+type gather fused into ONE one-hot matmul ----
    ids = ids_ref[...]                                             # (B*S, 1) int32
    typ = type_ref[...]                                            # (B*S, 1) int32
    col = lax.broadcasted_iota(jnp.int32, (bs, EMB_ROWS_PAD), 1)
    row = lax.broadcasted_iota(jnp.int32, (bs, 1), 0)
    pos = _mod_const(row, seq)                                     # position = r % S
    onehot = ((col == ids)
              | (col == pos + VOCAB)
              | (col == typ + (VOCAB + MAX_POS))).astype(jnp.float32)
    x = jnp.dot(onehot, emb_ref[...], preferred_element_type=jnp.float32)  # (B*S, H)
    x = _layernorm(x, vrow(V_EMB_G, hidden), vrow(V_EMB_B, hidden))
    # TODO(synk): embedding/attention/FFN/classifier dropout omitted (eval mode).

    # ---- block-diagonal + padding additive attention bias (layer-invariant) ----
    amask = amask_ref[...]                                         # (1, B*S) int32
    amask_all = jnp.concatenate([amask] * heads, axis=1)           # (1, N)
    r_blk = _div_const(lax.broadcasted_iota(jnp.int32, (n, n), 0), seq)
    c_blk = _div_const(lax.broadcasted_iota(jnp.int32, (n, n), 1), seq)
    keep = jnp.logical_and(r_blk == c_blk, amask_all > 0)
    attn_bias = jnp.where(keep, 0.0, -1e9).astype(jnp.float32)     # (N, N)

    for l in range(layers):
        wl = w_ref[l]                                              # (H, W_COLS)
        base = l * VROW_PER_LAYER

        # fused lane-dense QKV projection -> (B*S, 3H)
        qkv = (jnp.dot(x, wl[:, WC_QKV:WC_QKV + 3 * hidden],
                       preferred_element_type=jnp.float32)
               + vrow(base + V_BQKV, 3 * hidden))

        # stack every (head, batch) S-row block along the sublane axis:
        # the whole layer's attention is 2 MXU dots + ONE stacked softmax.
        q_all = jnp.concatenate(
            [qkv[:, h * head_dim:(h + 1) * head_dim] for h in range(heads)], axis=0)
        k_all = jnp.concatenate(
            [qkv[:, hidden + h * head_dim:hidden + (h + 1) * head_dim]
             for h in range(heads)], axis=0)
        v_all = jnp.concatenate(
            [qkv[:, 2 * hidden + h * head_dim:2 * hidden + (h + 1) * head_dim]
             for h in range(heads)], axis=0)                       # (N, Dh)

        s = lax.dot_general(q_all, k_all, (((1,), (1,)), ((), ())),
                            preferred_element_type=jnp.float32) * scale + attn_bias
        s = s - jnp.max(s, axis=-1, keepdims=True)
        p = jnp.exp(s)
        p = p / jnp.sum(p, axis=-1, keepdims=True)                 # exact softmax
        ctx_all = jnp.dot(p, v_all, preferred_element_type=jnp.float32)   # (N, Dh)
        ctx = jnp.concatenate(
            [ctx_all[h * bs:(h + 1) * bs] for h in range(heads)], axis=1)  # (B*S, H)

        # attention output projection + fused residual + layernorm
        attn_out = (jnp.dot(ctx, wl[:, WC_O:WC_O + hidden],
                            preferred_element_type=jnp.float32)
                    + vrow(base + V_BO, hidden))
        x = _layernorm(attn_out + x, vrow(base + V_LN1G, hidden),
                       vrow(base + V_LN1B, hidden))

        # feed-forward (GELU) + fused residual + layernorm (wo2 stored transposed)
        inter = _gelu(jnp.dot(x, wl[:, WC_I:WC_I + INTER],
                              preferred_element_type=jnp.float32)
                      + vrow(base + V_BI, INTER))
        ffn = (lax.dot_general(inter, wl[:, WC_O2T:WC_O2T + INTER],
                               (((1,), (1,)), ((), ())),
                               preferred_element_type=jnp.float32)
               + vrow(base + V_BO2, hidden))
        x = _layernorm(ffn + x, vrow(base + V_LN2G, hidden),
                       vrow(base + V_LN2B, hidden))

    # ---- pooler (tanh(dense([CLS]))) + classifier ----
    wh = w_ref[layers]                                             # (H, W_COLS)
    x_cls = jnp.concatenate(
        [x[b * seq:b * seq + 1, :] for b in range(batch)], axis=0)  # (B, H)
    pooled = jnp.tanh(jnp.dot(x_cls, wh[:, 0:hidden],
                              preferred_element_type=jnp.float32)
                      + vrow(V_POOL_B, hidden))
    logits = (jnp.dot(pooled, wh[:, hidden:hidden + NUM_LABELS],
                      preferred_element_type=jnp.float32)
              + vrow(V_CLS_B, NUM_LABELS))                         # (B, NUM_LABELS)
    logits_ref[...] = logits.astype(logits_ref.dtype)

    # ---- softmax cross-entropy (mean over batch); one-hot built in-kernel ----
    lab_oh = (labels_ref[...] ==
              lax.broadcasted_iota(jnp.int32, (batch, NUM_LABELS), 1)
              ).astype(jnp.float32)
    m = jnp.max(logits, axis=-1, keepdims=True)
    lse = m + jnp.log(jnp.sum(jnp.exp(logits - m), axis=-1, keepdims=True))
    nll = lse - jnp.sum(lab_oh * logits, axis=-1, keepdims=True)   # (B, 1)
    loss_ref[...] = (jnp.sum(nll, axis=0, keepdims=True)
                     * (1.0 / batch)).astype(loss_ref.dtype)


# ------------------------------- parameter init --------------------------------
def init_params(key):
    def normal(key, shape, std=0.02):
        return std * jax.random.normal(key, shape, dtype=jnp.float32)

    keys = iter(jax.random.split(key, 256))
    p = {
        "word_emb": normal(next(keys), (VOCAB, HIDDEN)),
        "pos_emb": normal(next(keys), (MAX_POS, HIDDEN)),
        "type_emb": normal(next(keys), (TYPE_VOCAB, HIDDEN)),
        "emb_ln_g": jnp.ones((HIDDEN,), jnp.float32),
        "emb_ln_b": jnp.zeros((HIDDEN,), jnp.float32),
        "layers": [],
        "pooler_w": normal(next(keys), (HIDDEN, HIDDEN)),
        "pooler_b": jnp.zeros((HIDDEN,), jnp.float32),
        "cls_w": normal(next(keys), (HIDDEN, NUM_LABELS)),
        "cls_b": jnp.zeros((NUM_LABELS,), jnp.float32),
    }
    for _ in range(LAYERS):
        p["layers"].append({
            "wq": normal(next(keys), (HIDDEN, HIDDEN)),
            "bq": jnp.zeros((HIDDEN,), jnp.float32),
            "wk": normal(next(keys), (HIDDEN, HIDDEN)),
            "bk": jnp.zeros((HIDDEN,), jnp.float32),
            "wv": normal(next(keys), (HIDDEN, HIDDEN)),
            "bv": jnp.zeros((HIDDEN,), jnp.float32),
            "wo": normal(next(keys), (HIDDEN, HIDDEN)),
            "bo": jnp.zeros((HIDDEN,), jnp.float32),
            "ln1_g": jnp.ones((HIDDEN,), jnp.float32),
            "ln1_b": jnp.zeros((HIDDEN,), jnp.float32),
            "wi": normal(next(keys), (HIDDEN, INTER)),
            "bi": jnp.zeros((INTER,), jnp.float32),
            "wo2": normal(next(keys), (INTER, HIDDEN)),
            "bo2": jnp.zeros((HIDDEN,), jnp.float32),
            "ln2_g": jnp.ones((HIDDEN,), jnp.float32),
            "ln2_b": jnp.zeros((HIDDEN,), jnp.float32),
        })
    return p


def pack_params(p):
    """One-time packing of the PyTorch-style parameter tree into 3 lane-dense
    slabs. Called ONCE outside the jitted forward (review item: hoist stacking
    out of the per-call path)."""
    emb = jnp.concatenate(
        [p["word_emb"], p["pos_emb"], p["type_emb"],
         jnp.zeros((EMB_ROWS_PAD - EMB_ROWS, HIDDEN), jnp.float32)], axis=0)

    def pad_row(v):
        return jnp.pad(v, (0, VEC_W - v.shape[0]))[None, :]

    w_blocks, vec_rows = [], []
    for l in p["layers"]:
        wqkv = jnp.concatenate([l["wq"], l["wk"], l["wv"]], axis=1)     # (H, 3H)
        w_blocks.append(jnp.concatenate(
            [wqkv, l["wo"], l["wi"], l["wo2"].T], axis=1))              # (H, 256)
        vec_rows += [pad_row(jnp.concatenate([l["bq"], l["bk"], l["bv"]])),
                     pad_row(l["bo"]), pad_row(l["ln1_g"]), pad_row(l["ln1_b"]),
                     pad_row(l["bi"]), pad_row(l["bo2"]),
                     pad_row(l["ln2_g"]), pad_row(l["ln2_b"])]
    head = jnp.concatenate(
        [p["pooler_w"], p["cls_w"],
         jnp.zeros((HIDDEN, W_COLS - HIDDEN - NUM_LABELS), jnp.float32)], axis=1)
    w_blocks.append(head)
    vec_rows += [pad_row(p["emb_ln_g"]), pad_row(p["emb_ln_b"]),
                 pad_row(p["pooler_b"]), pad_row(p["cls_b"])]

    return {"emb": emb,                              # (EMB_ROWS_PAD, H)
            "w": jnp.stack(w_blocks),                # (LAYERS+1, H, W_COLS)
            "vec": jnp.concatenate(vec_rows, axis=0)}  # (VEC_ROWS, VEC_W)


# ----------------------------------- forward -----------------------------------
@jax.jit
def bert_forward(packed, input_ids, attention_mask, token_type_ids, labels):
    """Mirrors BertForSequenceClassification(input_ids, attention_mask=...,
    labels=labels) in eval mode. Returns (loss, logits)."""
    B, S = input_ids.shape
    kernel = partial(_bert_fused_kernel, batch=B, seq=S, heads=HEADS,
                     head_dim=HEAD_DIM, layers=LAYERS)
    loss, logits = pl.pallas_call(
        kernel,
        out_shape=(jax.ShapeDtypeStruct((1, 1), jnp.float32),
                   jax.ShapeDtypeStruct((B, NUM_LABELS), jnp.float32)),
    )(
        input_ids.reshape(B * S, 1).astype(jnp.int32),
        token_type_ids.reshape(B * S, 1).astype(jnp.int32),
        attention_mask.reshape(1, B * S).astype(jnp.int32),
        labels.reshape(B, 1).astype(jnp.int32),
        packed["emb"], packed["w"], packed["vec"],
    )
    return loss[0, 0], logits


# ------------------------------------ main --------------------------------------
if __name__ == "__main__":
    key = jax.random.PRNGKey(0)
    k_param, k_ids, k_type, k_lab = jax.random.split(key, 4)

    params = init_params(k_param)
    packed = pack_params(params)          # one-time weight packing (outside jit)

    input_ids = jax.random.randint(k_ids, (BATCH, SEQ), 0, VOCAB, dtype=jnp.int32)
    attention_mask = jnp.ones((BATCH, SEQ), dtype=jnp.int32)
    # mask out the last two tokens of the second example to exercise masking
    attention_mask = attention_mask.at[1, SEQ - 2:].set(0)
    token_type_ids = jax.random.randint(k_type, (BATCH, SEQ), 0, TYPE_VOCAB,
                                        dtype=jnp.int32)
    labels = jax.random.randint(k_lab, (BATCH,), 0, NUM_LABELS, dtype=jnp.int32)

    loss, logits = bert_forward(packed, input_ids, attention_mask,
                                token_type_ids, labels)
    jax.block_until_ready((loss, logits))

    assert logits.shape == (BATCH, NUM_LABELS)
    assert loss.shape == ()
    assert bool(jnp.isfinite(loss)) and bool(jnp.all(jnp.isfinite(logits)))
    print("KERNEL_OK")
</pallas_src>

<mosaic_0001>
module attributes {stable_mosaic.version = 11 : i64} {
  func.func @_bert_fused_kernel(%arg0: memref<16x1xi32, #tpu.memory_space<vmem>>, %arg1: memref<16x1xi32, #tpu.memory_space<vmem>>, %arg2: memref<1x16xi32, #tpu.memory_space<vmem>>, %arg3: memref<2x1xi32, #tpu.memory_space<vmem>>, %arg4: memref<88x32xf32, #tpu.memory_space<vmem>>, %arg5: memref<3x32x256xf32, #tpu.memory_space<vmem>>, %arg6: memref<20x96xf32, #tpu.memory_space<vmem>>, %arg7: memref<1x1xf32, #tpu.memory_space<vmem>>, %arg8: memref<2x2xf32, #tpu.memory_space<vmem>>) attributes {dimension_semantics = [], scalar_prefetch = 0 : i64, scratch_operands = 0 : i64, tpu.core_type = #tpu.core_type<tc>} {
    %c0 = arith.constant 0 : index
    %c0_0 = arith.constant 0 : index
    %0 = vector.load %arg6[%c0, %c0_0] : memref<20x96xf32, #tpu.memory_space<vmem>>, vector<20x96xf32>
    %c0_1 = arith.constant 0 : index
    %c0_2 = arith.constant 0 : index
    %1 = vector.load %arg0[%c0_1, %c0_2] : memref<16x1xi32, #tpu.memory_space<vmem>>, vector<16x1xi32>
    %c0_3 = arith.constant 0 : index
    %c0_4 = arith.constant 0 : index
    %2 = vector.load %arg1[%c0_3, %c0_4] : memref<16x1xi32, #tpu.memory_space<vmem>>, vector<16x1xi32>
    %3 = tpu.iota {dimensions = array<i32: 1>} : vector<16x88xi32>
    %4 = tpu.iota {dimensions = array<i32: 0>} : vector<16x1xi32>
    %c7_i32 = arith.constant 7 : i32
    %5 = vector.broadcast %c7_i32 : i32 to vector<16x1xi32>
    %6 = arith.andi %4, %5 : vector<16x1xi32>
    %7 = vector.broadcast %1 : vector<16x1xi32> to vector<16x88xi32>
    %8 = arith.cmpi eq, %3, %7 : vector<16x88xi32>
    %c64_i32 = arith.constant 64 : i32
    %9 = vector.broadcast %c64_i32 : i32 to vector<16x1xi32>
    %10 = arith.addi %6, %9 : vector<16x1xi32>
    %11 = vector.broadcast %10 : vector<16x1xi32> to vector<16x88xi32>
    %12 = arith.cmpi eq, %3, %11 : vector<16x88xi32>
    %13 = arith.ori %8, %12 : vector<16x88xi1>
    %c80_i32 = arith.constant 80 : i32
    %14 = vector.broadcast %c80_i32 : i32 to vector<16x1xi32>
    %15 = arith.addi %2, %14 : vector<16x1xi32>
    %16 = vector.broadcast %15 : vector<16x1xi32> to vector<16x88xi32>
    %17 = arith.cmpi eq, %3, %16 : vector<16x88xi32>
    %18 = arith.ori %13, %17 : vector<16x88xi1>
    %19 = arith.extui %18 : vector<16x88xi1> to vector<16x88xi32>
    %20 = arith.sitofp %19 : vector<16x88xi32> to vector<16x88xf32>
    %c0_5 = arith.constant 0 : index
    %c0_6 = arith.constant 0 : index
    %21 = vector.load %arg4[%c0_5, %c0_6] : memref<88x32xf32, #tpu.memory_space<vmem>>, vector<88x32xf32>
    %cst = arith.constant dense<0.000000e+00> : vector<16x32xf32>
    %22 = tpu.matmul %20, %21, %cst {dimension_numbers = #tpu.dot_dimension_numbers<[1], [0], [0], [1], [0, 0, 1, 1], [], []>} : vector<16x88xf32>, vector<88x32xf32>, vector<16x32xf32> -> vector<16x32xf32>
    %23 = vector.extract_strided_slice %0 {offsets = [16, 0], sizes = [1, 32], strides = [1, 1]} : vector<20x96xf32> to vector<1x32xf32>
    %24 = vector.extract_strided_slice %0 {offsets = [17, 0], sizes = [1, 32], strides = [1, 1]} : vector<20x96xf32> to vector<1x32xf32>
    %cst_7 = arith.constant dense<0.000000e+00> : vector<16xf32>
    %25 = vector.multi_reduction <add>, %22, %cst_7 [1] : vector<16x32xf32> to vector<16xf32>
    %26 = vector.shape_cast %25 : vector<16xf32> to vector<16x1xf32>
    %cst_8 = arith.constant 3.200000e+01 : f32
    %27 = vector.broadcast %cst_8 : f32 to vector<16x1xf32>
    %28 = arith.divf %26, %27 : vector<16x1xf32>
    %29 = vector.broadcast %28 : vector<16x1xf32> to vector<16x32xf32>
    %30 = arith.subf %22, %29 : vector<16x32xf32>
    %31 = arith.mulf %30, %30 : vector<16x32xf32>
    %cst_9 = arith.constant dense<0.000000e+00> : vector<16xf32>
    %32 = vector.multi_reduction <add>, %31, %cst_9 [1] : vector<16x32xf32> to vector<16xf32>
    %33 = vector.shape_cast %32 : vector<16xf32> to vector<16x1xf32>
    %cst_10 = arith.constant 3.200000e+01 : f32
    %34 = vector.broadcast %cst_10 : f32 to vector<16x1xf32>
    %35 = arith.divf %33, %34 : vector<16x1xf32>
    %cst_11 = arith.constant 9.99999996E-13 : f32
    %36 = vector.broadcast %cst_11 : f32 to vector<16x1xf32>
    %37 = arith.addf %35, %36 : vector<16x1xf32>
    %38 = math.rsqrt %37 : vector<16x1xf32>
    %39 = vector.broadcast %38 : vector<16x1xf32> to vector<16x32xf32>
    %40 = arith.mulf %30, %39 : vector<16x32xf32>
    %41 = vector.broadcast %23 : vector<1x32xf32> to vector<16x32xf32>
    %42 = arith.mulf %40, %41 : vector<16x32xf32>
    %43 = vector.broadcast %24 : vector<1x32xf32> to vector<16x32xf32>
    %44 = arith.addf %42, %43 : vector<16x32xf32>
    %c0_12 = arith.constant 0 : index
    %c0_13 = arith.constant 0 : index
    %45 = vector.load %arg2[%c0_12, %c0_13] : memref<1x16xi32, #tpu.memory_space<vmem>>, vector<1x16xi32>
    %46 = tpu.concatenate %45, %45 in 1 : vector<1x16xi32>, vector<1x16xi32> -> vector<1x32xi32>
    %47 = tpu.iota {dimensions = array<i32: 0>} : vector<32x32xi32>
    %c3_i32 = arith.constant 3 : i32
    %48 = vector.broadcast %c3_i32 : i32 to vector<32x32xi32>
    %49 = arith.shrsi %47, %48 : vector<32x32xi32>
    %50 = tpu.iota {dimensions = array<i32: 1>} : vector<32x32xi32>
    %c3_i32_14 = arith.constant 3 : i32
    %51 = vector.broadcast %c3_i32_14 : i32 to vector<32x32xi32>
    %52 = arith.shrsi %50, %51 : vector<32x32xi32>
    %53 = arith.cmpi eq, %49, %52 : vector<32x32xi32>
    %c0_i32 = arith.constant 0 : i32
    %54 = vector.broadcast %c0_i32 : i32 to vector<1x32xi32>
    %55 = arith.cmpi sgt, %46, %54 : vector<1x32xi32>
    %56 = vector.broadcast %55 : vector<1x32xi1> to vector<32x32xi1>
    %57 = arith.andi %53, %56 : vector<32x32xi1>
    %cst_15 = arith.constant 0.000000e+00 : f32
    %cst_16 = arith.constant -1.000000e+09 : f32
    %58 = vector.broadcast %cst_15 : f32 to vector<32x32xf32>
    %59 = vector.broadcast %cst_16 : f32 to vector<32x32xf32>
    %60 = arith.select %57, %58, %59 : vector<32x32xi1>, vector<32x32xf32>
    %c0_17 = arith.constant 0 : index
    %c0_18 = arith.constant 0 : index
    %c0_19 = arith.constant 0 : index
    %61 = vector.load %arg5[%c0_17, %c0_18, %c0_19] : memref<3x32x256xf32, #tpu.memory_space<vmem>>, vector<1x32x256xf32>
    %62 = vector.shape_cast %61 : vector<1x32x256xf32> to vector<32x256xf32>
    %63 = vector.extract_strided_slice %62 {offsets = [0, 0], sizes = [32, 96], strides = [1, 1]} : vector<32x256xf32> to vector<32x96xf32>
    %cst_20 = arith.constant dense<0.000000e+00> : vector<16x96xf32>
    %64 = tpu.matmul %44, %63, %cst_20 {dimension_numbers = #tpu.dot_dimension_numbers<[1], [0], [0], [1], [0, 0, 1, 1], [], []>} : vector<16x32xf32>, vector<32x96xf32>, vector<16x96xf32> -> vector<16x96xf32>
    %65 = vector.extract_strided_slice %0 {offsets = [0, 0], sizes = [1, 96], strides = [1, 1]} : vector<20x96xf32> to vector<1x96xf32>
    %66 = vector.broadcast %65 : vector<1x96xf32> to vector<16x96xf32>
    %67 = arith.addf %64, %66 : vector<16x96xf32>
    %68 = vector.extract_strided_slice %67 {offsets = [0, 0], sizes = [16, 16], strides = [1, 1]} : vector<16x96xf32> to vector<16x16xf32>
    %69 = vector.extract_strided_slice %67 {offsets = [0, 16], sizes = [16, 16], strides = [1, 1]} : vector<16x96xf32> to vector<16x16xf32>
    %70 = tpu.concatenate %68, %69 in 0 : vector<16x16xf32>, vector<16x16xf32> -> vector<32x16xf32>
    %71 = vector.extract_strided_slice %67 {offsets = [0, 32], sizes = [16, 16], strides = [1, 1]} : vector<16x96xf32> to vector<16x16xf32>
    %72 = vector.extract_strided_slice %67 {offsets = [0, 48], sizes = [16, 16], strides = [1, 1]} : vector<16x96xf32> to vector<16x16xf32>
    %73 = tpu.concatenate %71, %72 in 0 : vector<16x16xf32>, vector<16x16xf32> -> vector<32x16xf32>
    %74 = vector.extract_strided_slice %67 {offsets = [0, 64], sizes = [16, 16], strides = [1, 1]} : vector<16x96xf32> to vector<16x16xf32>
    %75 = vector.extract_strided_slice %67 {offsets = [0, 80], sizes = [16, 16], strides = [1, 1]} : vector<16x96xf32> to vector<16x16xf32>
    %76 = tpu.concatenate %74, %75 in 0 : vector<16x16xf32>, vector<16x16xf32> -> vector<32x16xf32>
    %cst_21 = arith.constant dense<0.000000e+00> : vector<32x32xf32>
    %77 = tpu.matmul %70, %73, %cst_21 {dimension_numbers = #tpu.dot_dimension_numbers<[1], [1], [0], [0], [0, 0, 1, 0], [], []>} : vector<32x16xf32>, vector<32x16xf32>, vector<32x32xf32> -> vector<32x32xf32>
    %cst_22 = arith.constant 2.500000e-01 : f32
    %78 = vector.broadcast %cst_22 : f32 to vector<32x32xf32>
    %79 = arith.mulf %77, %78 : vector<32x32xf32>
    %80 = arith.addf %79, %60 : vector<32x32xf32>
    %cst_23 = arith.constant dense<0xFF800000> : vector<32xf32>
    %81 = vector.multi_reduction <maximumf>, %80, %cst_23 [1] : vector<32x32xf32> to vector<32xf32>
    %82 = vector.shape_cast %81 : vector<32xf32> to vector<32x1xf32>
    %83 = vector.broadcast %82 : vector<32x1xf32> to vector<32x32xf32>
    %84 = arith.subf %80, %83 : vector<32x32xf32>
    %85 = math.exp %84 : vector<32x32xf32>
    %cst_24 = arith.constant dense<0.000000e+00> : vector<32xf32>
    %86 = vector.multi_reduction <add>, %85, %cst_24 [1] : vector<32x32xf32> to vector<32xf32>
    %87 = vector.shape_cast %86 : vector<32xf32> to vector<32x1xf32>
    %88 = vector.broadcast %87 : vector<32x1xf32> to vector<32x32xf32>
    %89 = arith.divf %85, %88 : vector<32x32xf32>
    %cst_25 = arith.constant dense<0.000000e+00> : vector<32x16xf32>
    %90 = tpu.matmul %89, %76, %cst_25 {dimension_numbers = #tpu.dot_dimension_numbers<[1], [0], [0], [1], [0, 0, 1, 1], [], []>} : vector<32x32xf32>, vector<32x16xf32>, vector<32x16xf32> -> vector<32x16xf32>
    %91 = vector.extract_strided_slice %90 {offsets = [0, 0], sizes = [16, 16], strides = [1, 1]} : vector<32x16xf32> to vector<16x16xf32>
    %92 = vector.extract_strided_slice %90 {offsets = [16, 0], sizes = [16, 16], strides = [1, 1]} : vector<32x16xf32> to vector<16x16xf32>
    %93 = tpu.concatenate %91, %92 in 1 : vector<16x16xf32>, vector<16x16xf32> -> vector<16x32xf32>
    %94 = vector.extract_strided_slice %62 {offsets = [0, 96], sizes = [32, 32], strides = [1, 1]} : vector<32x256xf32> to vector<32x32xf32>
    %cst_26 = arith.constant dense<0.000000e+00> : vector<16x32xf32>
    %95 = tpu.matmul %93, %94, %cst_26 {dimension_numbers = #tpu.dot_dimension_numbers<[1], [0], [0], [1], [0, 0, 1, 1], [], []>} : vector<16x32xf32>, vector<32x32xf32>, vector<16x32xf32> -> vector<16x32xf32>
    %96 = vector.extract_strided_slice %0 {offsets = [1, 0], sizes = [1, 32], strides = [1, 1]} : vector<20x96xf32> to vector<1x32xf32>
    %97 = vector.broadcast %96 : vector<1x32xf32> to vector<16x32xf32>
    %98 = arith.addf %95, %97 : vector<16x32xf32>
    %99 = arith.addf %98, %44 : vector<16x32xf32>
    %100 = vector.extract_strided_slice %0 {offsets = [2, 0], sizes = [1, 32], strides = [1, 1]} : vector<20x96xf32> to vector<1x32xf32>
    %101 = vector.extract_strided_slice %0 {offsets = [3, 0], sizes = [1, 32], strides = [1, 1]} : vector<20x96xf32> to vector<1x32xf32>
    %cst_27 = arith.constant dense<0.000000e+00> : vector<16xf32>
    %102 = vector.multi_reduction <add>, %99, %cst_27 [1] : vector<16x32xf32> to vector<16xf32>
    %103 = vector.shape_cast %102 : vector<16xf32> to vector<16x1xf32>
    %cst_28 = arith.constant 3.200000e+01 : f32
    %104 = vector.broadcast %cst_28 : f32 to vector<16x1xf32>
    %105 = arith.divf %103, %104 : vector<16x1xf32>
    %106 = vector.broadcast %105 : vector<16x1xf32> to vector<16x32xf32>
    %107 = arith.subf %99, %106 : vector<16x32xf32>
    %108 = arith.mulf %107, %107 : vector<16x32xf32>
    %cst_29 = arith.constant dense<0.000000e+00> : vector<16xf32>
    %109 = vector.multi_reduction <add>, %108, %cst_29 [1] : vector<16x32xf32> to vector<16xf32>
    %110 = vector.shape_cast %109 : vector<16xf32> to vector<16x1xf32>
    %cst_30 = arith.constant 3.200000e+01 : f32
    %111 = vector.broadcast %cst_30 : f32 to vector<16x1xf32>
    %112 = arith.divf %110, %111 : vector<16x1xf32>
    %cst_31 = arith.constant 9.99999996E-13 : f32
    %113 = vector.broadcast %cst_31 : f32 to vector<16x1xf32>
    %114 = arith.addf %112, %113 : vector<16x1xf32>
    %115 = math.rsqrt %114 : vector<16x1xf32>
    %116 = vector.broadcast %115 : vector<16x1xf32> to vector<16x32xf32>
    %117 = arith.mulf %107, %116 : vector<16x32xf32>
    %118 = vector.broadcast %100 : vector<1x32xf32> to vector<16x32xf32>
    %119 = arith.mulf %117, %118 : vector<16x32xf32>
    %120 = vector.broadcast %101 : vector<1x32xf32> to vector<16x32xf32>
    %121 = arith.addf %119, %120 : vector<16x32xf32>
    %122 = vector.extract_strided_slice %62 {offsets = [0, 128], sizes = [32, 64], strides = [1, 1]} : vector<32x256xf32> to vector<32x64xf32>
    %cst_32 = arith.constant dense<0.000000e+00> : vector<16x64xf32>
    %123 = tpu.matmul %121, %122, %cst_32 {dimension_numbers = #tpu.dot_dimension_numbers<[1], [0], [0], [1], [0, 0, 1, 1], [], []>} : vector<16x32xf32>, vector<32x64xf32>, vector<16x64xf32> -> vector<16x64xf32>
    %124 = vector.extract_strided_slice %0 {offsets = [4, 0], sizes = [1, 64], strides = [1, 1]} : vector<20x96xf32> to vector<1x64xf32>
    %125 = vector.broadcast %124 : vector<1x64xf32> to vector<16x64xf32>
    %126 = arith.addf %123, %125 : vector<16x64xf32>
    %cst_33 = arith.constant 5.000000e-01 : f32
    %127 = vector.broadcast %cst_33 : f32 to vector<16x64xf32>
    %128 = arith.mulf %127, %126 : vector<16x64xf32>
    %cst_34 = arith.constant 4.471500e-02 : f32
    %129 = vector.broadcast %cst_34 : f32 to vector<16x64xf32>
    %130 = arith.mulf %129, %126 : vector<16x64xf32>
    %131 = arith.mulf %130, %126 : vector<16x64xf32>
    %132 = arith.mulf %131, %126 : vector<16x64xf32>
    %133 = arith.addf %126, %132 : vector<16x64xf32>
    %cst_35 = arith.constant 0.797884583 : f32
    %134 = vector.broadcast %cst_35 : f32 to vector<16x64xf32>
    %135 = arith.mulf %134, %133 : vector<16x64xf32>
    %136 = math.tanh %135 : vector<16x64xf32>
    %cst_36 = arith.constant 1.000000e+00 : f32
    %137 = vector.broadcast %cst_36 : f32 to vector<16x64xf32>
    %138 = arith.addf %137, %136 : vector<16x64xf32>
    %139 = arith.mulf %128, %138 : vector<16x64xf32>
    %140 = vector.extract_strided_slice %62 {offsets = [0, 192], sizes = [32, 64], strides = [1, 1]} : vector<32x256xf32> to vector<32x64xf32>
    %cst_37 = arith.constant dense<0.000000e+00> : vector<16x32xf32>
    %141 = tpu.matmul %139, %140, %cst_37 {dimension_numbers = #tpu.dot_dimension_numbers<[1], [1], [0], [0], [0, 0, 1, 0], [], []>} : vector<16x64xf32>, vector<32x64xf32>, vector<16x32xf32> -> vector<16x32xf32>
    %142 = vector.extract_strided_slice %0 {offsets = [5, 0], sizes = [1, 32], strides = [1, 1]} : vector<20x96xf32> to vector<1x32xf32>
    %143 = vector.broadcast %142 : vector<1x32xf32> to vector<16x32xf32>
    %144 = arith.addf %141, %143 : vector<16x32xf32>
    %145 = arith.addf %144, %121 : vector<16x32xf32>
    %146 = vector.extract_strided_slice %0 {offsets = [6, 0], sizes = [1, 32], strides = [1, 1]} : vector<20x96xf32> to vector<1x32xf32>
    %147 = vector.extract_strided_slice %0 {offsets = [7, 0], sizes = [1, 32], strides = [1, 1]} : vector<20x96xf32> to vector<1x32xf32>
    %cst_38 = arith.constant dense<0.000000e+00> : vector<16xf32>
    %148 = vector.multi_reduction <add>, %145, %cst_38 [1] : vector<16x32xf32> to vector<16xf32>
    %149 = vector.shape_cast %148 : vector<16xf32> to vector<16x1xf32>
    %cst_39 = arith.constant 3.200000e+01 : f32
    %150 = vector.broadcast %cst_39 : f32 to vector<16x1xf32>
    %151 = arith.divf %149, %150 : vector<16x1xf32>
    %152 = vector.broadcast %151 : vector<16x1xf32> to vector<16x32xf32>
    %153 = arith.subf %145, %152 : vector<16x32xf32>
    %154 = arith.mulf %153, %153 : vector<16x32xf32>
    %cst_40 = arith.constant dense<0.000000e+00> : vector<16xf32>
    %155 = vector.multi_reduction <add>, %154, %cst_40 [1] : vector<16x32xf32> to vector<16xf32>
    %156 = vector.shape_cast %155 : vector<16xf32> to vector<16x1xf32>
    %cst_41 = arith.constant 3.200000e+01 : f32
    %157 = vector.broadcast %cst_41 : f32 to vector<16x1xf32>
    %158 = arith.divf %156, %157 : vector<16x1xf32>
    %cst_42 = arith.constant 9.99999996E-13 : f32
    %159 = vector.broadcast %cst_42 : f32 to vector<16x1xf32>
    %160 = arith.addf %158, %159 : vector<16x1xf32>
    %161 = math.rsqrt %160 : vector<16x1xf32>
    %162 = vector.broadcast %161 : vector<16x1xf32> to vector<16x32xf32>
    %163 = arith.mulf %153, %162 : vector<16x32xf32>
    %164 = vector.broadcast %146 : vector<1x32xf32> to vector<16x32xf32>
    %165 = arith.mulf %163, %164 : vector<16x32xf32>
    %166 = vector.broadcast %147 : vector<1x32xf32> to vector<16x32xf32>
    %167 = arith.addf %165, %166 : vector<16x32xf32>
    %c1 = arith.constant 1 : index
    %c0_43 = arith.constant 0 : index
    %c0_44 = arith.constant 0 : index
    %168 = vector.load %arg5[%c1, %c0_43, %c0_44] : memref<3x32x256xf32, #tpu.memory_space<vmem>>, vector<1x32x256xf32>
    %169 = vector.shape_cast %168 : vector<1x32x256xf32> to vector<32x256xf32>
    %170 = vector.extract_strided_slice %169 {offsets = [0, 0], sizes = [32, 96], strides = [1, 1]} : vector<32x256xf32> to vector<32x96xf32>
    %cst_45 = arith.constant dense<0.000000e+00> : vector<16x96xf32>
    %171 = tpu.matmul %167, %170, %cst_45 {dimension_numbers = #tpu.dot_dimension_numbers<[1], [0], [0], [1], [0, 0, 1, 1], [], []>} : vector<16x32xf32>, vector<32x96xf32>, vector<16x96xf32> -> vector<16x96xf32>
    %172 = vector.extract_strided_slice %0 {offsets = [8, 0], sizes = [1, 96], strides = [1, 1]} : vector<20x96xf32> to vector<1x96xf32>
    %173 = vector.broadcast %172 : vector<1x96xf32> to vector<16x96xf32>
    %174 = arith.addf %171, %173 : vector<16x96xf32>
    %175 = vector.extract_strided_slice %174 {offsets = [0, 0], sizes = [16, 16], strides = [1, 1]} : vector<16x96xf32> to vector<16x16xf32>
    %176 = vector.extract_strided_slice %174 {offsets = [0, 16], sizes = [16, 16], strides = [1, 1]} : vector<16x96xf32> to vector<16x16xf32>
    %177 = tpu.concatenate %175, %176 in 0 : vector<16x16xf32>, vector<16x16xf32> -> vector<32x16xf32>
    %178 = vector.extract_strided_slice %174 {offsets = [0, 32], sizes = [16, 16], strides = [1, 1]} : vector<16x96xf32> to vector<16x16xf32>
    %179 = vector.extract_strided_slice %174 {offsets = [0, 48], sizes = [16, 16], strides = [1, 1]} : vector<16x96xf32> to vector<16x16xf32>
    %180 = tpu.concatenate %178, %179 in 0 : vector<16x16xf32>, vector<16x16xf32> -> vector<32x16xf32>
    %181 = vector.extract_strided_slice %174 {offsets = [0, 64], sizes = [16, 16], strides = [1, 1]} : vector<16x96xf32> to vector<16x16xf32>
    %182 = vector.extract_strided_slice %174 {offsets = [0, 80], sizes = [16, 16], strides = [1, 1]} : vector<16x96xf32> to vector<16x16xf32>
    %183 = tpu.concatenate %181, %182 in 0 : vector<16x16xf32>, vector<16x16xf32> -> vector<32x16xf32>
    %cst_46 = arith.constant dense<0.000000e+00> : vector<32x32xf32>
    %184 = tpu.matmul %177, %180, %cst_46 {dimension_numbers = #tpu.dot_dimension_numbers<[1], [1], [0], [0], [0, 0, 1, 0], [], []>} : vector<32x16xf32>, vector<32x16xf32>, vector<32x32xf32> -> vector<32x32xf32>
    %cst_47 = arith.constant 2.500000e-01 : f32
    %185 = vector.broadcast %cst_47 : f32 to vector<32x32xf32>
    %186 = arith.mulf %184, %185 : vector<32x32xf32>
    %187 = arith.addf %186, %60 : vector<32x32xf32>
    %cst_48 = arith.constant dense<0xFF800000> : vector<32xf32>
    %188 = vector.multi_reduction <maximumf>, %187, %cst_48 [1] : vector<32x32xf32> to vector<32xf32>
    %189 = vector.shape_cast %188 : vector<32xf32> to vector<32x1xf32>
    %190 = vector.broadcast %189 : vector<32x1xf32> to vector<32x32xf32>
    %191 = arith.subf %187, %190 : vector<32x32xf32>
    %192 = math.exp %191 : vector<32x32xf32>
    %cst_49 = arith.constant dense<0.000000e+00> : vector<32xf32>
    %193 = vector.multi_reduction <add>, %192, %cst_49 [1] : vector<32x32xf32> to vector<32xf32>
    %194 = vector.shape_cast %193 : vector<32xf32> to vector<32x1xf32>
    %195 = vector.broadcast %194 : vector<32x1xf32> to vector<32x32xf32>
    %196 = arith.divf %192, %195 : vector<32x32xf32>
    %cst_50 = arith.constant dense<0.000000e+00> : vector<32x16xf32>
    %197 = tpu.matmul %196, %183, %cst_50 {dimension_numbers = #tpu.dot_dimension_numbers<[1], [0], [0], [1], [0, 0, 1, 1], [], []>} : vector<32x32xf32>, vector<32x16xf32>, vector<32x16xf32> -> vector<32x16xf32>
    %198 = vector.extract_strided_slice %197 {offsets = [0, 0], sizes = [16, 16], strides = [1, 1]} : vector<32x16xf32> to vector<16x16xf32>
    %199 = vector.extract_strided_slice %197 {offsets = [16, 0], sizes = [16, 16], strides = [1, 1]} : vector<32x16xf32> to vector<16x16xf32>
    %200 = tpu.concatenate %198, %199 in 1 : vector<16x16xf32>, vector<16x16xf32> -> vector<16x32xf32>
    %201 = vector.extract_strided_slice %169 {offsets = [0, 96], sizes = [32, 32], strides = [1, 1]} : vector<32x256xf32> to vector<32x32xf32>
    %cst_51 = arith.constant dense<0.000000e+00> : vector<16x32xf32>
    %202 = tpu.matmul %200, %201, %cst_51 {dimension_numbers = #tpu.dot_dimension_numbers<[1], [0], [0], [1], [0, 0, 1, 1], [], []>} : vector<16x32xf32>, vector<32x32xf32>, vector<16x32xf32> -> vector<16x32xf32>
    %203 = vector.extract_strided_slice %0 {offsets = [9, 0], sizes = [1, 32], strides = [1, 1]} : vector<20x96xf32> to vector<1x32xf32>
    %204 = vector.broadcast %203 : vector<1x32xf32> to vector<16x32xf32>
    %205 = arith.addf %202, %204 : vector<16x32xf32>
    %206 = arith.addf %205, %167 : vector<16x32xf32>
    %207 = vector.extract_strided_slice %0 {offsets = [10, 0], sizes = [1, 32], strides = [1, 1]} : vector<20x96xf32> to vector<1x32xf32>
    %208 = vector.extract_strided_slice %0 {offsets = [11, 0], sizes = [1, 32], strides = [1, 1]} : vector<20x96xf32> to vector<1x32xf32>
    %cst_52 = arith.constant dense<0.000000e+00> : vector<16xf32>
    %209 = vector.multi_reduction <add>, %206, %cst_52 [1] : vector<16x32xf32> to vector<16xf32>
    %210 = vector.shape_cast %209 : vector<16xf32> to vector<16x1xf32>
    %cst_53 = arith.constant 3.200000e+01 : f32
    %211 = vector.broadcast %cst_53 : f32 to vector<16x1xf32>
    %212 = arith.divf %210, %211 : vector<16x1xf32>
    %213 = vector.broadcast %212 : vector<16x1xf32> to vector<16x32xf32>
    %214 = arith.subf %206, %213 : vector<16x32xf32>
    %215 = arith.mulf %214, %214 : vector<16x32xf32>
    %cst_54 = arith.constant dense<0.000000e+00> : vector<16xf32>
    %216 = vector.multi_reduction <add>, %215, %cst_54 [1] : vector<16x32xf32> to vector<16xf32>
    %217 = vector.shape_cast %216 : vector<16xf32> to vector<16x1xf32>
    %cst_55 = arith.constant 3.200000e+01 : f32
    %218 = vector.broadcast %cst_55 : f32 to vector<16x1xf32>
    %219 = arith.divf %217, %218 : vector<16x1xf32>
    %cst_56 = arith.constant 9.99999996E-13 : f32
    %220 = vector.broadcast %cst_56 : f32 to vector<16x1xf32>
    %221 = arith.addf %219, %220 : vector<16x1xf32>
    %222 = math.rsqrt %221 : vector<16x1xf32>
    %223 = vector.broadcast %222 : vector<16x1xf32> to vector<16x32xf32>
    %224 = arith.mulf %214, %223 : vector<16x32xf32>
    %225 = vector.broadcast %207 : vector<1x32xf32> to vector<16x32xf32>
    %226 = arith.mulf %224, %225 : vector<16x32xf32>
    %227 = vector.broadcast %208 : vector<1x32xf32> to vector<16x32xf32>
    %228 = arith.addf %226, %227 : vector<16x32xf32>
    %229 = vector.extract_strided_slice %169 {offsets = [0, 128], sizes = [32, 64], strides = [1, 1]} : vector<32x256xf32> to vector<32x64xf32>
    %cst_57 = arith.constant dense<0.000000e+00> : vector<16x64xf32>
    %230 = tpu.matmul %228, %229, %cst_57 {dimension_numbers = #tpu.dot_dimension_numbers<[1], [0], [0], [1], [0, 0, 1, 1], [], []>} : vector<16x32xf32>, vector<32x64xf32>, vector<16x64xf32> -> vector<16x64xf32>
    %231 = vector.extract_strided_slice %0 {offsets = [12, 0], sizes = [1, 64], strides = [1, 1]} : vector<20x96xf32> to vector<1x64xf32>
    %232 = vector.broadcast %231 : vector<1x64xf32> to vector<16x64xf32>
    %233 = arith.addf %230, %232 : vector<16x64xf32>
    %cst_58 = arith.constant 5.000000e-01 : f32
    %234 = vector.broadcast %cst_58 : f32 to vector<16x64xf32>
    %235 = arith.mulf %234, %233 : vector<16x64xf32>
    %cst_59 = arith.constant 4.471500e-02 : f32
    %236 = vector.broadcast %cst_59 : f32 to vector<16x64xf32>
    %237 = arith.mulf %236, %233 : vector<16x64xf32>
    %238 = arith.mulf %237, %233 : vector<16x64xf32>
    %239 = arith.mulf %238, %233 : vector<16x64xf32>
    %240 = arith.addf %233, %239 : vector<16x64xf32>
    %cst_60 = arith.constant 0.797884583 : f32
    %241 = vector.broadcast %cst_60 : f32 to vector<16x64xf32>
    %242 = arith.mulf %241, %240 : vector<16x64xf32>
    %243 = math.tanh %242 : vector<16x64xf32>
    %cst_61 = arith.constant 1.000000e+00 : f32
    %244 = vector.broadcast %cst_61 : f32 to vector<16x64xf32>
    %245 = arith.addf %244, %243 : vector<16x64xf32>
    %246 = arith.mulf %235, %245 : vector<16x64xf32>
    %247 = vector.extract_strided_slice %169 {offsets = [0, 192], sizes = [32, 64], strides = [1, 1]} : vector<32x256xf32> to vector<32x64xf32>
    %cst_62 = arith.constant dense<0.000000e+00> : vector<16x32xf32>
    %248 = tpu.matmul %246, %247, %cst_62 {dimension_numbers = #tpu.dot_dimension_numbers<[1], [1], [0], [0], [0, 0, 1, 0], [], []>} : vector<16x64xf32>, vector<32x64xf32>, vector<16x32xf32> -> vector<16x32xf32>
    %249 = vector.extract_strided_slice %0 {offsets = [13, 0], sizes = [1, 32], strides = [1, 1]} : vector<20x96xf32> to vector<1x32xf32>
    %250 = vector.broadcast %249 : vector<1x32xf32> to vector<16x32xf32>
    %251 = arith.addf %248, %250 : vector<16x32xf32>
    %252 = arith.addf %251, %228 : vector<16x32xf32>
    %253 = vector.extract_strided_slice %0 {offsets = [14, 0], sizes = [1, 32], strides = [1, 1]} : vector<20x96xf32> to vector<1x32xf32>
    %254 = vector.extract_strided_slice %0 {offsets = [15, 0], sizes = [1, 32], strides = [1, 1]} : vector<20x96xf32> to vector<1x32xf32>
    %cst_63 = arith.constant dense<0.000000e+00> : vector<16xf32>
    %255 = vector.multi_reduction <add>, %252, %cst_63 [1] : vector<16x32xf32> to vector<16xf32>
    %256 = vector.shape_cast %255 : vector<16xf32> to vector<16x1xf32>
    %cst_64 = arith.constant 3.200000e+01 : f32
    %257 = vector.broadcast %cst_64 : f32 to vector<16x1xf32>
    %258 = arith.divf %256, %257 : vector<16x1xf32>
    %259 = vector.broadcast %258 : vector<16x1xf32> to vector<16x32xf32>
    %260 = arith.subf %252, %259 : vector<16x32xf32>
    %261 = arith.mulf %260, %260 : vector<16x32xf32>
    %cst_65 = arith.constant dense<0.000000e+00> : vector<16xf32>
    %262 = vector.multi_reduction <add>, %261, %cst_65 [1] : vector<16x32xf32> to vector<16xf32>
    %263 = vector.shape_cast %262 : vector<16xf32> to vector<16x1xf32>
    %cst_66 = arith.constant 3.200000e+01 : f32
    %264 = vector.broadcast %cst_66 : f32 to vector<16x1xf32>
    %265 = arith.divf %263, %264 : vector<16x1xf32>
    %cst_67 = arith.constant 9.99999996E-13 : f32
    %266 = vector.broadcast %cst_67 : f32 to vector<16x1xf32>
    %267 = arith.addf %265, %266 : vector<16x1xf32>
    %268 = math.rsqrt %267 : vector<16x1xf32>
    %269 = vector.broadcast %268 : vector<16x1xf32> to vector<16x32xf32>
    %270 = arith.mulf %260, %269 : vector<16x32xf32>
    %271 = vector.broadcast %253 : vector<1x32xf32> to vector<16x32xf32>
    %272 = arith.mulf %270, %271 : vector<16x32xf32>
    %273 = vector.broadcast %254 : vector<1x32xf32> to vector<16x32xf32>
    %274 = arith.addf %272, %273 : vector<16x32xf32>
    %c2 = arith.constant 2 : index
    %c0_68 = arith.constant 0 : index
    %c0_69 = arith.constant 0 : index
    %275 = vector.load %arg5[%c2, %c0_68, %c0_69] : memref<3x32x256xf32, #tpu.memory_space<vmem>>, vector<1x32x256xf32>
    %276 = vector.shape_cast %275 : vector<1x32x256xf32> to vector<32x256xf32>
    %277 = vector.extract_strided_slice %274 {offsets = [0, 0], sizes = [1, 32], strides = [1, 1]} : vector<16x32xf32> to vector<1x32xf32>
    %278 = vector.extract_strided_slice %274 {offsets = [8, 0], sizes = [1, 32], strides = [1, 1]} : vector<16x32xf32> to vector<1x32xf32>
    %279 = tpu.concatenate %277, %278 in 0 : vector<1x32xf32>, vector<1x32xf32> -> vector<2x32xf32>
    %280 = vector.extract_strided_slice %276 {offsets = [0, 0], sizes = [32, 32], strides = [1, 1]} : vector<32x256xf32> to vector<32x32xf32>
    %cst_70 = arith.constant dense<0.000000e+00> : vector<2x32xf32>
    %281 = tpu.matmul %279, %280, %cst_70 {dimension_numbers = #tpu.dot_dimension_numbers<[1], [0], [0], [1], [0, 0, 1, 1], [], []>} : vector<2x32xf32>, vector<32x32xf32>, vector<2x32xf32> -> vector<2x32xf32>
    %282 = vector.extract_strided_slice %0 {offsets = [18, 0], sizes = [1, 32], strides = [1, 1]} : vector<20x96xf32> to vector<1x32xf32>
    %283 = vector.broadcast %282 : vector<1x32xf32> to vector<2x32xf32>
    %284 = arith.addf %281, %283 : vector<2x32xf32>
    %285 = math.tanh %284 : vector<2x32xf32>
    %286 = vector.extract_strided_slice %276 {offsets = [0, 32], sizes = [32, 2], strides = [1, 1]} : vector<32x256xf32> to vector<32x2xf32>
    %cst_71 = arith.constant dense<0.000000e+00> : vector<2x2xf32>
    %287 = tpu.matmul %285, %286, %cst_71 {dimension_numbers = #tpu.dot_dimension_numbers<[1], [0], [0], [1], [0, 0, 1, 1], [], []>} : vector<2x32xf32>, vector<32x2xf32>, vector<2x2xf32> -> vector<2x2xf32>
    %288 = vector.extract_strided_slice %0 {offsets = [19, 0], sizes = [1, 2], strides = [1, 1]} : vector<20x96xf32> to vector<1x2xf32>
    %289 = vector.broadcast %288 : vector<1x2xf32> to vector<2x2xf32>
    %290 = arith.addf %287, %289 : vector<2x2xf32>
    %c0_72 = arith.constant 0 : index
    %c0_73 = arith.constant 0 : index
    %291 = vector.load %arg8[%c0_72, %c0_73] : memref<2x2xf32, #tpu.memory_space<vmem>>, vector<2x2xf32>
    tpu.vector_store %arg8[%c0_72, %c0_73], %290 {strides = array<i32>} : memref<2x2xf32, #tpu.memory_space<vmem>>, vector<2x2xf32>,
    %c0_74 = arith.constant 0 : index
    %c0_75 = arith.constant 0 : index
    %292 = vector.load %arg3[%c0_74, %c0_75] : memref<2x1xi32, #tpu.memory_space<vmem>>, vector<2x1xi32>
    %293 = tpu.iota {dimensions = array<i32: 1>} : vector<2x2xi32>
    %294 = vector.broadcast %292 : vector<2x1xi32> to vector<2x2xi32>
    %295 = arith.cmpi eq, %294, %293 : vector<2x2xi32>
    %296 = arith.extui %295 : vector<2x2xi1> to vector<2x2xi32>
    %297 = arith.sitofp %296 : vector<2x2xi32> to vector<2x2xf32>
    %cst_76 = arith.constant dense<0xFF800000> : vector<2xf32>
    %298 = vector.multi_reduction <maximumf>, %290, %cst_76 [1] : vector<2x2xf32> to vector<2xf32>
    %299 = vector.shape_cast %298 : vector<2xf32> to vector<2x1xf32>
    %300 = vector.broadcast %299 : vector<2x1xf32> to vector<2x2xf32>
    %301 = arith.subf %290, %300 : vector<2x2xf32>
    %302 = math.exp %301 : vector<2x2xf32>
    %cst_77 = arith.constant dense<0.000000e+00> : vector<2xf32>
    %303 = vector.multi_reduction <add>, %302, %cst_77 [1] : vector<2x2xf32> to vector<2xf32>
    %304 = vector.shape_cast %303 : vector<2xf32> to vector<2x1xf32>
    %305 = math.log %304 : vector<2x1xf32>
    %306 = arith.addf %299, %305 : vector<2x1xf32>
    %307 = arith.mulf %297, %290 : vector<2x2xf32>
    %cst_78 = arith.constant dense<0.000000e+00> : vector<2xf32>
    %308 = vector.multi_reduction <add>, %307, %cst_78 [1] : vector<2x2xf32> to vector<2xf32>
    %309 = vector.shape_cast %308 : vector<2xf32> to vector<2x1xf32>
    %310 = arith.subf %306, %309 : vector<2x1xf32>
    %cst_79 = arith.constant dense<0.000000e+00> : vector<1xf32>
    %311 = vector.multi_reduction <add>, %310, %cst_79 [0] : vector<2x1xf32> to vector<1xf32>
    %312 = vector.shape_cast %311 : vector<1xf32> to vector<1x1xf32>
    %cst_80 = arith.constant 5.000000e-01 : f32
    %313 = vector.broadcast %cst_80 : f32 to vector<1x1xf32>
    %314 = arith.mulf %312, %313 : vector<1x1xf32>
    %c0_81 = arith.constant 0 : index
    %c0_82 = arith.constant 0 : index
    %315 = vector.load %arg7[%c0_81, %c0_82] : memref<1x1xf32, #tpu.memory_space<vmem>>, vector<1x1xf32>
    tpu.vector_store %arg7[%c0_81, %c0_82], %314 {strides = array<i32>} : memref<1x1xf32, #tpu.memory_space<vmem>>, vector<1x1xf32>,
    return
  }
}

</mosaic_0001>

<llo_original>
// kernel: bert_forward.1
$region0: #{bert_forward.1}
  #allocation0 [shape = 'u32[]', space=smem, size = 0x4, offset = 0x4, fixed_abs, tag = 'smem constant byte address 0x4 - core index']
  #allocation1 [shape = 'u32[144,128]{1,0:T(1,128)}', space=vmem, size = 0x12000, scoped, tag = 'internal scratch']
  %s0 = inlined_call_operand.vmem [shape: s32[16,1], index: 0, kind: input, shape index: {}]
  %s1 = inlined_call_operand.vmem [shape: s32[16,1], index: 1, kind: input, shape index: {}]
  %s2 = inlined_call_operand.vmem [shape: s32[1,16], index: 2, kind: input, shape index: {}]
  %s3 = inlined_call_operand.vmem [shape: s32[2,1], index: 3, kind: input, shape index: {}]
  %s4 = inlined_call_operand.vmem [shape: f32[88,32], index: 4, kind: input, shape index: {}]
  %s5 = inlined_call_operand.hbm [shape: f32[3,32,256], index: 5, kind: input, shape index: {}]
  %s6 = inlined_call_operand.vmem [shape: f32[20,96], index: 6, kind: input, shape index: {}]
  %s7 = inlined_call_operand.hbm [shape: f32[1,1], index: 7, kind: output, shape index: {0}]
  %s8 = inlined_call_operand.hbm [shape: f32[2,2], index: 8, kind: output, shape index: {1}]
  %9 = xla_tuple %s7, %s8
  %s10 = sld [smem:[#allocation0]]
  $region50: #{bert_forward.1} parent=0
    _
  %s12 = ssub.s32 1, %s10
  %s13 = scalar_select 0, %s12, %s10
  $region1: #{bert_forward.1} parent=0
    #allocation2 [shape = 'u8[98304]{0}', space=vmem, size = 0x18000, scoped, tag = 'input window, operand 5, single buffered']
    #allocation3 [shape = 's32[1]{0}', space=sflag, size = 0x4, scoped, tag = 'scoped memory for bert_forward.1']
    #allocation4 [shape = 's32[1]{0}', space=sflag, size = 0x4, scoped, tag = 'scoped memory for bert_forward.1']
    #allocation5 [shape = 'u8[512]{0}', space=vmem, size = 0x400, scoped, tag = 'output window, operand 0, single buffered']
    #allocation6 [shape = 'u8[1024]{0}', space=vmem, size = 0x400, scoped, tag = 'output window, operand 1, single buffered']
    #allocation7 [shape = 's32[1]{0}', space=sflag, size = 0x4, scoped, tag = 'scoped memory for bert_forward.1']
    %14 = vsyncpa [#allocation3], 0
    %15 = vsyncpa [#allocation4], 0
    %16 = vsyncpa [#allocation7], 0
    // Predicated region
    $region2: #{bert_forward.1} parent=1 // pred_check
      _
    $region3: #{bert_forward.1} parent=1 // pred_check_branch
      %18 = sbr.rel (0) target = $region5
    $region4: #{bert_forward.1} parent=1 // pred_region
      _
    $region5: #{bert_forward.1} parent=1 // pred_fallthru
      _
    // Predicated region
    $region6: #{bert_forward.1} parent=1 // pred_check
      _
    $region7: #{bert_forward.1} parent=1 // pred_check_branch
      %20 = sbr.rel (0) target = $region9
    $region8: #{bert_forward.1} parent=1 // pred_region
      _
    $region9: #{bert_forward.1} parent=1 // pred_fallthru
      _
    // Predicated region
    $region10: #{bert_forward.1} parent=1 // pred_check
      _
    $region11: #{bert_forward.1} parent=1 // pred_check_branch
      %22 = sbr.rel (0) target = $region13
    $region12: #{bert_forward.1} parent=1 // pred_region
      _
    $region13: #{bert_forward.1} parent=1 // pred_fallthru
      _
    // Predicated region
    $region14: #{bert_forward.1} parent=1 // pred_check
      _
    $region15: #{bert_forward.1} parent=1 // pred_check_branch
      %24 = sbr.rel (0) target = $region17
    $region16: #{bert_forward.1} parent=1 // pred_region
      _
    $region17: #{bert_forward.1} parent=1 // pred_fallthru
      _
    // Predicated region
    $region18: #{bert_forward.1} parent=1 // pred_check
      _
    $region19: #{bert_forward.1} parent=1 // pred_check_branch
      %26 = sbr.rel (0) target = $region21
    $region20: #{bert_forward.1} parent=1 // pred_region
      _
    $region21: #{bert_forward.1} parent=1 // pred_fallthru
      _
    // Predicated region
    $region22: #{bert_forward.1} parent=1 // pred_check
      _
    $region23: #{bert_forward.1} parent=1 // pred_check_branch
      %28 = sbr.rel (0) target = $region25
    $region24: #{bert_forward.1} parent=1 // pred_region
      %s30 = ssub.s32 3072, 3072
      %31 = vsyncadd [#allocation3], %s30
      %s32 = sshll.u32 [#allocation2], 4
      %s33 = int_to_ptr.vmem [resolvable:$true] %s32
      %38 = dma.hbm_to_vmem [thread:$0]  %s5, 3072, %s33, [#allocation3], 256, 256, 16
    $region25: #{bert_forward.1} parent=1 // pred_fallthru
      _
    // Predicated region
    $region26: #{bert_forward.1} parent=1 // pred_check
      _
    $region27: #{bert_forward.1} parent=1 // pred_check_branch
      %40 = sbr.rel (0) target = $region29
    $region28: #{bert_forward.1} parent=1 // pred_region
      _
    $region29: #{bert_forward.1} parent=1 // pred_fallthru
      _
    // Predicated region
    $region30: #{bert_forward.1} parent=1 // pred_check
      _
    $region31: #{bert_forward.1} parent=1 // pred_check_branch
      %42 = sbr.rel (0) target = $region33
    $region32: #{bert_forward.1} parent=1 // pred_region
      %43 = dma.done [#allocation3], 3072
    $region33: #{bert_forward.1} parent=1 // pred_fallthru
      _
    %v44 = vld [vmem:[%s6] sm:$0xff]
    %v45 = vld [vmem:[%s6 + $0x8] sm:$0xff]
    %v46 = vld [vmem:[%s6 + $0x10] sm:$0xf]
    %v47 = vld [vmem:[%s0] sm:$0xff]
    %v48 = vld [vmem:[%s0 + $0x8] sm:$0xff]
    %v49 = vld [vmem:[%s1] sm:$0xff]
    %v50 = vld [vmem:[%s1 + $0x8] sm:$0xff]
    %v51 = vlaneseq
    %v52 = vand.u32 %v51, 127
    %v53 = vlaneseq
    %v54 = vshrl.u32 %v53, 7
    %v55 = vadd.s32 %v54, 8
    %v56 = vand.u32 %v54, 7
    %v57 = vand.u32 %v55, 7
    %58 = vset.pattern.permute.xlu0 0
    %59 = vperm.xlu0 %58, %v47
    %v60 = vpop.permute.xlu0 %59
    %61 = vset.pattern.permute.xlu0 0
    %62 = vperm.xlu0 %61, %v48
    %v63 = vpop.permute.xlu0 %62
    %vm64 = vcmp.eq.s32.totalorder %v52, %v60
    %vm65 = vcmp.eq.s32.totalorder %v52, %v63
    %v66 = vadd.s32 %v56, 64
    %v67 = vadd.s32 %v57, 64
    %vm68 = vcmp.eq.s32.totalorder %v52, %v66
    %vm69 = vcmp.eq.s32.totalorder %v52, %v67
    %vm70 = vmor %vm64, %vm68
    %vm71 = vmor %vm65, %vm69
    %v72 = vadd.s32 %v49, 80
    %v73 = vadd.s32 %v50, 80
    %74 = vset.pattern.permute.xlu0 0
    %75 = vperm.xlu0 %74, %v72
    %v76 = vpop.permute.xlu0 %75
    %77 = vset.pattern.permute.xlu0 0
    %78 = vperm.xlu0 %77, %v73
    %v79 = vpop.permute.xlu0 %78
    %vm80 = vcmp.eq.s32.totalorder %v52, %v76
    %vm81 = vcmp.eq.s32.totalorder %v52, %v79
    %vm82 = vmor %vm70, %vm80
    %vm83 = vmor %vm71, %vm81
    %v84 = vsel %vm82, 1, 0
    %v85 = vsel %vm83, 1, 0
    %v86 = vcvt.s32.f32 %v84
    %v87 = vcvt.s32.f32 %v85
    %v88 = vld [vmem:[%s4] sm:$0xff]
    %v89 = vld [vmem:[%s4 + $0x8] sm:$0xff]
    %v90 = vld [vmem:[%s4 + $0x10] sm:$0xff]
    %v91 = vld [vmem:[%s4 + $0x18] sm:$0xff]
    %v92 = vld [vmem:[%s4 + $0x20] sm:$0xff]
    %v93 = vld [vmem:[%s4 + $0x28] sm:$0xff]
    %v94 = vld [vmem:[%s4 + $0x30] sm:$0xff]
    %v95 = vld [vmem:[%s4 + $0x38] sm:$0xff]
    %v96 = vld [vmem:[%s4 + $0x40] sm:$0xff]
    %v97 = vld [vmem:[%s4 + $0x48] sm:$0xff]
    %v98 = vld [vmem:[%s4 + $0x50] sm:$0xff]
    %vm99 = vcmask 719872
    %v101 = vsel %vm99, %v86, 0
    %v104 = vsel %vm99, %v87, 0
    %106 = vmatprep.subr.mxu0 0.0
    %107 = vmatpush1.msra.mxu0 %v88
    %108 = vmatprep.subr.mxu0 0.0
    %109 = vmatpush1.msra.mxu0 %v89
    %110 = vmatprep.subr.mxu0 0.0
    %111 = vmatpush1.msra.mxu0 %v90
    %112 = vmatprep.subr.mxu0 0.0
    %113 = vmatpush1.msra.mxu0 %v91
    %114 = vmatprep.subr.mxu0 0.0
    %115 = vmatpush1.msra.mxu0 %v92
    %116 = vmatprep.subr.mxu0 0.0
    %117 = vmatpush1.msra.mxu0 %v93
    %118 = vmatprep.subr.mxu0 0.0
    %119 = vmatpush1.msra.mxu0 %v94
    %120 = vmatprep.subr.mxu0 0.0
    %121 = vmatpush1.msra.mxu0 %v95
    %122 = vmatprep.subr.mxu0 0.0
    %123 = vmatpush1.msra.mxu0 %v96
    %124 = vmatprep.subr.mxu0 0.0
    %125 = vmatpush1.msra.mxu0 %v97
    %126 = vmatprep.subr.mxu0 0.0
    %127 = vmatpush1.msra.mxu0 %v98
    %128 = vmatprep.subr.mxu0 0.0
    %129 = vmatpush1.msra.mxu0 0.0
    %130 = vmatprep.subr.mxu0 0.0
    %131 = vmatpush1.msra.mxu0 0.0
    %132 = vmatprep.subr.mxu0 0.0
    %133 = vmatpush1.msra.mxu0 0.0
    %134 = vmatprep.subr.mxu0 0.0
    %135 = vmatpush1.msra.mxu0 0.0
    %136 = vmatprep.subr.mxu0 0.0
    %137 = vmatpush1.msra.mxu0 0.0
    %138 = vmatprep.subr.mxu0 0.0
    %139 = vmatpush1.msra.mxu0 0.0
    %140 = vmatprep.subr.mxu0 0.0
    %141 = vmatpush1.msra.mxu0 0.0
    %142 = vmatprep.subr.mxu0 0.0
    %143 = vmatpush1.msra.mxu0 0.0
    %144 = vmatprep.subr.mxu0 0.0
    %145 = vmatpush1.msra.mxu0 0.0
    %146 = vmatprep.subr.mxu0 0.0
    %147 = vmatpush1.msra.mxu0 0.0
    %148 = vmatprep.subr.mxu0 0.0
    %149 = vmatpush1.msra.mxu0 0.0
    %150 = vmatprep.subr.mxu0 0.0
    %151 = vmatpush1.msra.mxu0 0.0
    %152 = vmatprep.subr.mxu0 0.0
    %153 = vmatpush1.msra.mxu0 0.0
    %154 = vmatprep.subr.mxu0 0.0
    %155 = vmatpush1.msra.mxu0 0.0
    %156 = vmatprep.subr.mxu0 0.0
    %157 = vmatpush1.msra.mxu0 0.0
    %158 = vmatprep.subr.mxu0 0.0
    %159 = vmatpush1.msra.mxu0 0.0
    %160 = vmatprep.subr.mxu0 0.0
    %161 = vmatpush1.msra.mxu0 0.0
    %162 = vmatprep.subr.mxu0 0.0
    %163 = vmatpush1.msra.mxu0 0.0
    %164 = vmatprep.subr.mxu0 0.0
    %165 = vmatpush1.msra.mxu0 0.0
    %166 = vmatprep.subr.mxu0 0.0
    %167 = vmatpush1.msra.mxu0 0.0
    %168 = vmatprep.subr.mxu0 0.0
    %169 = vmatpush1.msra.mxu0 0.0
    %170 = vmatprep.mubr.f32.mxu0 0.0
    %171 = vmatmul.mubr.f32.gmra.mrb[0].mxu0 %v101
    %v172 = vpop.f32.mrb[0].mxu0
    %v173 = vadd.f32 0.0, %v172
    %v174 = vpop.f32.mrb[0].mxu0
    %175 = vmatprep.mubr.f32.mxu0 0.0
    %176 = vmatmul.mubr.f32.gmra.mrb[0].mxu0 %v104
    %v177 = vpop.f32.mrb[0].mxu0
    %v178 = vadd.f32 0.0, %v177
    %v179 = vpop.f32.mrb[0].mxu0
    %180 = vdwg.mxu0
    %vm181 = vcmask 261120
    %v182 = vsel %vm181, %v173, 0.0
    %183 = vadd.xlane.f32.xlu0 %v182
    %v184 = vpop.xlane.xlu0 %183
    %v185 = vsel %vm181, %v178, 0.0
    %186 = vadd.xlane.f32.xlu0 %v185
    %v187 = vpop.xlane.xlu0 %186
    %v188 = vrcp.pop 32.0
    %v189 = vmul.f32 %v184, %v188
    %v190 = vmul.f32 %v187, %v188
    %v191 = vsub.f32 %v173, %v189
    %v192 = vsub.f32 %v178, %v190
    %v193 = vmul.f32 %v191, %v191
    %v194 = vmul.f32 %v192, %v192
    %v195 = vsel %vm181, %v193, 0.0
    %196 = vadd.xlane.f32.xlu0 %v195
    %v197 = vpop.xlane.xlu0 %196
    %v198 = vsel %vm181, %v194, 0.0
    %199 = vadd.xlane.f32.xlu0 %v198
    %v200 = vpop.xlane.xlu0 %199
    %v201 = vmul.f32 %v197, %v188
    %v202 = vmul.f32 %v200, %v188
    %v203 = vadd.f32 %v201, 1e-12
    %v204 = vadd.f32 %v202, 1e-12
    %v205 = vrsqrt.pop %v203
    %v206 = vrsqrt.pop %v204
    %v207 = vmul.f32 %v191, %v205
    %v208 = vmul.f32 %v192, %v206
    %v209 = vlaneseq
    %v210 = vshrl.u32 %v209, 7
    %v211 = vsub.s32 0, %v210
    %v212 = vrot.slane %v46, %v211
    %v213 = vmul.f32 %v207, %v212
    %v214 = vmul.f32 %v208, %v212
    %v215 = vlaneseq
    %v216 = vshrl.u32 %v215, 7
    %v217 = vsub.s32 1, %v216
    %v218 = vrot.slane %v46, %v217
    %v219 = vadd.f32 %v213, %v218
    %v220 = vadd.f32 %v214, %v218
    %v221 = vld [vmem:[%s2] sm:$0x1]
    %v222 = vlaneseq
    %v223 = vshrl.u32 %v222, 7
    %v224 = vsub.s32 0, %v223
    %v225 = vrot.slane %v221, %v224
    %226 = vrot.lane.b32.xlu0 %v225, 16
    %v227 = vpop.permute.xlu0 %226
    %vm228 = vcmask 130048
    %v229 = vsel %vm228, %v221, %v227
    %v230 = vadd.s32 %v54, 16
    %v231 = vadd.s32 %v54, 24
    %v232 = vshra.s32 %v54, 3
    %v233 = vshra.s32 %v55, 3
    %v234 = vshra.s32 %v230, 3
    %v235 = vshra.s32 %v231, 3
    %v236 = vshra.s32 %v52, 3
    %vm237 = vcmp.eq.s32.totalorder %v232, %v236
    %vm238 = vcmp.eq.s32.totalorder %v233, %v236
    %vm239 = vcmp.eq.s32.totalorder %v234, %v236
    %vm240 = vcmp.eq.s32.totalorder %v235, %v236
    %vm241 = vcmp.gt.s32.totalorder %v229, 0
    %v242 = vsel %vm241, 1, 0
    %v243 = vlaneseq
    %v244 = vshrl.u32 %v243, 7
    %v245 = vsub.s32 0, %v244
    %v246 = vrot.slane %v242, %v245
    %vm247 = vcmp.eq.s32.totalorder %v246, 1
    %vm248 = vmand %vm237, %vm247
    %vm249 = vmand %vm238, %vm247
    %vm250 = vmand %vm239, %vm247
    %vm251 = vmand %vm240, %vm247
    %v252 = vsel %vm248, 0.0, -1e+09
    %v253 = vsel %vm249, 0.0, -1e+09
    %v254 = vsel %vm250, 0.0, -1e+09
    %v255 = vsel %vm251, 0.0, -1e+09
    %v256 = vld [vmem:[#allocation2] sm:$0xff]
    %v257 = vld [vmem:[#allocation2 + $0x8] sm:$0xff]
    %v258 = vld [vmem:[#allocation2 + $0x10] sm:$0xff]
    %v259 = vld [vmem:[#allocation2 + $0x18] sm:$0xff]
    %v260 = vld [vmem:[#allocation2 + $0x20] sm:$0xff]
    %v261 = vld [vmem:[#allocation2 + $0x28] sm:$0xff]
    %v262 = vld [vmem:[#allocation2 + $0x30] sm:$0xff]
    %v263 = vld [vmem:[#allocation2 + $0x38] sm:$0xff]
    %v264 = vlaneseq
    %v265 = vshrl.u32 %v264, 7
    %v266 = vsub.s32 0, %v265
    %v267 = vrot.slane %v44, %v266
    %v269 = vsel %vm181, %v219, 0
    %v272 = vsel %vm181, %v220, 0
    %274 = vmatprep.subr.mxu0 0.0
    %275 = vmatpush1.msra.mxu0 %v256
    %276 = vmatprep.subr.mxu0 0.0
    %277 = vmatpush1.msra.mxu0 %v258
    %278 = vmatprep.subr.mxu0 0.0
    %279 = vmatpush1.msra.mxu0 %v260
    %280 = vmatprep.subr.mxu0 0.0
    %281 = vmatpush1.msra.mxu0 %v262
    %282 = vmatprep.subr.mxu0 0.0
    %283 = vmatpush1.msra.mxu0 0.0
    %284 = vmatprep.subr.mxu0 0.0
    %285 = vmatpush1.msra.mxu0 0.0
    %286 = vmatprep.subr.mxu0 0.0
    %287 = vmatpush1.msra.mxu0 0.0
    %288 = vmatprep.subr.mxu0 0.0
    %289 = vmatpush1.msra.mxu0 0.0
    %290 = vmatprep.subr.mxu0 0.0
    %291 = vmatpush1.msra.mxu0 0.0
    %292 = vmatprep.subr.mxu0 0.0
    %293 = vmatpush1.msra.mxu0 0.0
    %294 = vmatprep.subr.mxu0 0.0
    %295 = vmatpush1.msra.mxu0 0.0
    %296 = vmatprep.subr.mxu0 0.0
    %297 = vmatpush1.msra.mxu0 0.0
    %298 = vmatprep.subr.mxu0 0.0
    %299 = vmatpush1.msra.mxu0 0.0
    %300 = vmatprep.subr.mxu0 0.0
    %301 = vmatpush1.msra.mxu0 0.0
    %302 = vmatprep.subr.mxu0 0.0
    %303 = vmatpush1.msra.mxu0 0.0
    %304 = vmatprep.subr.mxu0 0.0
    %305 = vmatpush1.msra.mxu0 0.0
    %306 = vmatprep.subr.mxu0 0.0
    %307 = vmatpush1.msra.mxu0 0.0
    %308 = vmatprep.subr.mxu0 0.0
    %309 = vmatpush1.msra.mxu0 0.0
    %310 = vmatprep.subr.mxu0 0.0
    %311 = vmatpush1.msra.mxu0 0.0
    %312 = vmatprep.subr.mxu0 0.0
    %313 = vmatpush1.msra.mxu0 0.0
    %314 = vmatprep.subr.mxu0 0.0
    %315 = vmatpush1.msra.mxu0 0.0
    %316 = vmatprep.subr.mxu0 0.0
    %317 = vmatpush1.msra.mxu0 0.0
    %318 = vmatprep.subr.mxu0 0.0
    %319 = vmatpush1.msra.mxu0 0.0
    %320 = vmatprep.subr.mxu0 0.0
    %321 = vmatpush1.msra.mxu0 0.0
    %322 = vmatprep.subr.mxu0 0.0
    %323 = vmatpush1.msra.mxu0 0.0
    %324 = vmatprep.subr.mxu0 0.0
    %325 = vmatpush1.msra.mxu0 0.0
    %326 = vmatprep.subr.mxu0 0.0
    %327 = vmatpush1.msra.mxu0 0.0
    %328 = vmatprep.subr.mxu0 0.0
    %329 = vmatpush1.msra.mxu0 0.0
    %330 = vmatprep.subr.mxu0 0.0
    %331 = vmatpush1.msra.mxu0 0.0
    %332 = vmatprep.subr.mxu0 0.0
    %333 = vmatpush1.msra.mxu0 0.0
    %334 = vmatprep.subr.mxu0 0.0
    %335 = vmatpush1.msra.mxu0 0.0
    %336 = vmatprep.subr.mxu0 0.0
    %337 = vmatpush1.msra.mxu0 0.0
    %338 = vmatprep.mubr.f32.mxu0 0.0
    %339 = vmatmul.mubr.f32.gmra.mrb[0].mxu0 %v269
    %v340 = vpop.f32.mrb[0].mxu0
    %v341 = vadd.f32 %v267, %v340
    %v342 = vpop.f32.mrb[0].mxu0
    %343 = vmatprep.mubr.f32.mxu0 0.0
    %344 = vmatmul.mubr.f32.gmra.mrb[0].mxu0 %v272
    %v345 = vpop.f32.mrb[0].mxu0
    %v346 = vadd.f32 %v267, %v345
    %v347 = vpop.f32.mrb[0].mxu0
    %348 = vdwg.mxu0
    %351 = vrot.lane.b32.xlu0 %v341, 112
    %v352 = vpop.permute.xlu0 %351
    %353 = vrot.lane.b32.xlu0 %v346, 112
    %v354 = vpop.permute.xlu0 %353
    %355 = vrot.lane.b32.xlu0 %v341, 96
    %v356 = vpop.permute.xlu0 %355
    %357 = vrot.lane.b32.xlu0 %v346, 96
    %v358 = vpop.permute.xlu0 %357
    %359 = vrot.lane.b32.xlu0 %v352, 96
    %v360 = vpop.permute.xlu0 %359
    %361 = vrot.lane.b32.xlu0 %v354, 96
    %v362 = vpop.permute.xlu0 %361
    %v363 = vsel %vm228, %v341, 0
    %v365 = vsel %vm228, %v346, 0
    %v367 = vsel %vm228, %v352, 0
    %v369 = vsel %vm228, %v354, 0
    %v371 = vsel %vm228, %v356, 0
    %v373 = vsel %vm228, %v358, 0
    %v375 = vsel %vm228, %v360, 0
    %v377 = vsel %vm228, %v362, 0
    %379 = vmatprep.subr.mxu0 0.0
    %380 = vmatpush1.xpose.msra.mxu0 %v371
    %381 = vmatprep.subr.mxu0 0.0
    %382 = vmatpush1.xpose.msra.mxu0 %v373
    %383 = vmatprep.subr.mxu0 0.0
    %384 = vmatpush1.xpose.msra.mxu0 %v375
    %385 = vmatprep.subr.mxu0 0.0
    %386 = vmatpush1.xpose.msra.mxu0 %v377
    %387 = vmatprep.subr.mxu0 0.0
    %388 = vmatpush1.xpose.msra.mxu0 0.0
    %389 = vmatprep.subr.mxu0 0.0
    %390 = vmatpush1.xpose.msra.mxu0 0.0
    %391 = vmatprep.subr.mxu0 0.0
    %392 = vmatpush1.xpose.msra.mxu0 0.0
    %393 = vmatprep.subr.mxu0 0.0
    %394 = vmatpush1.xpose.msra.mxu0 0.0
    %395 = vmatprep.subr.mxu0 0.0
    %396 = vmatpush1.xpose.msra.mxu0 0.0
    %397 = vmatprep.subr.mxu0 0.0
    %398 = vmatpush1.xpose.msra.mxu0 0.0
    %399 = vmatprep.subr.mxu0 0.0
    %400 = vmatpush1.xpose.msra.mxu0 0.0
    %401 = vmatprep.subr.mxu0 0.0
    %402 = vmatpush1.xpose.msra.mxu0 0.0
    %403 = vmatprep.subr.mxu0 0.0
    %404 = vmatpush1.xpose.msra.mxu0 0.0
    %405 = vmatprep.subr.mxu0 0.0
    %406 = vmatpush1.xpose.msra.mxu0 0.0
    %407 = vmatprep.subr.mxu0 0.0
    %408 = vmatpush1.xpose.msra.mxu0 0.0
    %409 = vmatprep.subr.mxu0 0.0
    %410 = vmatpush1.xpose.msra.mxu0 0.0
    %411 = vmatprep.subr.mxu0 0.0
    %412 = vmatpush1.xpose.msra.mxu0 0.0
    %413 = vmatprep.subr.mxu0 0.0
    %414 = vmatpush1.xpose.msra.mxu0 0.0
    %415 = vmatprep.subr.mxu0 0.0
    %416 = vmatpush1.xpose.msra.mxu0 0.0
    %417 = vmatprep.subr.mxu0 0.0
    %418 = vmatpush1.xpose.msra.mxu0 0.0
    %419 = vmatprep.subr.mxu0 0.0
    %420 = vmatpush1.xpose.msra.mxu0 0.0
    %421 = vmatprep.subr.mxu0 0.0
    %422 = vmatpush1.xpose.msra.mxu0 0.0
    %423 = vmatprep.subr.mxu0 0.0
    %424 = vmatpush1.xpose.msra.mxu0 0.0
    %425 = vmatprep.subr.mxu0 0.0
    %426 = vmatpush1.xpose.msra.mxu0 0.0
    %427 = vmatprep.subr.mxu0 0.0
    %428 = vmatpush1.xpose.msra.mxu0 0.0
    %429 = vmatprep.subr.mxu0 0.0
    %430 = vmatpush1.xpose.msra.mxu0 0.0
    %431 = vmatprep.subr.mxu0 0.0
    %432 = vmatpush1.xpose.msra.mxu0 0.0
    %433 = vmatprep.subr.mxu0 0.0
    %434 = vmatpush1.xpose.msra.mxu0 0.0
    %435 = vmatprep.subr.mxu0 0.0
    %436 = vmatpush1.xpose.msra.mxu0 0.0
    %437 = vmatprep.subr.mxu0 0.0
    %438 = vmatpush1.xpose.msra.mxu0 0.0
    %439 = vmatprep.subr.mxu0 0.0
    %440 = vmatpush1.xpose.msra.mxu0 0.0
    %441 = vmatprep.subr.mxu0 0.0
    %442 = vmatpush1.xpose.msra.mxu0 0.0
    %443 = vmatprep.mubr.f32.mxu0 0.0
    %444 = vmatmul.mubr.f32.gmra.mrb[0].mxu0 %v363
    %v445 = vpop.f32.mrb[0].mxu0
    %v446 = vadd.f32 0.0, %v445
    %v447 = vpop.f32.mrb[0].mxu0
    %448 = vmatprep.mubr.f32.mxu0 0.0
    %449 = vmatmul.mubr.f32.gmra.mrb[0].mxu0 %v365
    %v450 = vpop.f32.mrb[0].mxu0
    %v451 = vadd.f32 0.0, %v450
    %v452 = vpop.f32.mrb[0].mxu0
    %453 = vmatprep.mubr.f32.mxu0 0.0
    %454 = vmatmul.mubr.f32.gmra.mrb[0].mxu0 %v367
    %v455 = vpop.f32.mrb[0].mxu0
    %v456 = vadd.f32 0.0, %v455
    %v457 = vpop.f32.mrb[0].mxu0
    %458 = vmatprep.mubr.f32.mxu0 0.0
    %459 = vmatmul.mubr.f32.gmra.mrb[0].mxu0 %v369
    %v460 = vpop.f32.mrb[0].mxu0
    %v461 = vadd.f32 0.0, %v460
    %v462 = vpop.f32.mrb[0].mxu0
    %463 = vdwg.mxu0
    %v464 = vmul.f32 %v446, 0.25
    %v465 = vmul.f32 %v451, 0.25
    %v466 = vmul.f32 %v456, 0.25
    %v467 = vmul.f32 %v461, 0.25
    %v468 = vadd.f32 %v464, %v252
    %v469 = vadd.f32 %v465, %v253
    %v470 = vadd.f32 %v466, %v254
    %v471 = vadd.f32 %v467, %v255
    %v472 = vsel %vm181, %v468, -inf
    %473 = vmax.xlane.f32.xlu0 %v472
    %v474 = vpop.xlane.xlu0 %473
    %v475 = vsel %vm181, %v469, -inf
    %476 = vmax.xlane.f32.xlu0 %v475
    %v477 = vpop.xlane.xlu0 %476
    %v478 = vsel %vm181, %v470, -inf
    %479 = vmax.xlane.f32.xlu0 %v478
    %v480 = vpop.xlane.xlu0 %479
    %v481 = vsel %vm181, %v471, -inf
    %482 = vmax.xlane.f32.xlu0 %v481
    %v483 = vpop.xlane.xlu0 %482
    %v484 = vsub.f32 %v468, %v474
    %v485 = vsub.f32 %v469, %v477
    %v486 = vsub.f32 %v470, %v480
    %v487 = vsub.f32 %v471, %v483
    %v488 = vmul.f32 %v484, 1.442695
    %v489 = vpow.pop %v488
    %v490 = vmul.f32 %v485, 1.442695
    %v491 = vpow.pop %v490
    %v492 = vmul.f32 %v486, 1.442695
    %v493 = vpow.pop %v492
    %v494 = vmul.f32 %v487, 1.442695
    %v495 = vpow.pop %v494
    %v496 = vsel %vm181, %v489, 0.0
    %497 = vadd.xlane.f32.xlu0 %v496
    %v498 = vpop.xlane.xlu0 %497
    %v499 = vsel %vm181, %v491, 0.0
    %500 = vadd.xlane.f32.xlu0 %v499
    %v501 = vpop.xlane.xlu0 %500
    %v502 = vsel %vm181, %v493, 0.0
    %503 = vadd.xlane.f32.xlu0 %v502
    %v504 = vpop.xlane.xlu0 %503
    %v505 = vsel %vm181, %v495, 0.0
    %506 = vadd.xlane.f32.xlu0 %v505
    %v507 = vpop.xlane.xlu0 %506
    %v508 = vrcp.pop %v498
    %v509 = vmul.f32 %v489, %v508
    %v510 = vrcp.pop %v501
    %v511 = vmul.f32 %v491, %v510
    %v512 = vrcp.pop %v504
    %v513 = vmul.f32 %v493, %v512
    %v514 = vrcp.pop %v507
    %v515 = vmul.f32 %v495, %v514
    %516 = vrot.lane.b32.xlu0 %v341, 64
    %v517 = vpop.permute.xlu0 %516
    %518 = vrot.lane.b32.xlu0 %v346, 64
    %v519 = vpop.permute.xlu0 %518
    %520 = vrot.lane.b32.xlu0 %v352, 64
    %v521 = vpop.permute.xlu0 %520
    %522 = vrot.lane.b32.xlu0 %v354, 64
    %v523 = vpop.permute.xlu0 %522
    %v529 = vsel %vm181, %v509, 0
    %v532 = vsel %vm181, %v511, 0
    %v535 = vsel %vm181, %v513, 0
    %v538 = vsel %vm181, %v515, 0
    %540 = vmatprep.subr.mxu0 0.0
    %541 = vmatpush1.msra.mxu0 %v517
    %542 = vmatprep.subr.mxu0 0.0
    %543 = vmatpush1.msra.mxu0 %v519
    %544 = vmatprep.subr.mxu0 0.0
    %545 = vmatpush1.msra.mxu0 %v521
    %546 = vmatprep.subr.mxu0 0.0
    %547 = vmatpush1.msra.mxu0 %v523
    %548 = vmatprep.subr.mxu0 0.0
    %549 = vmatpush1.msra.mxu0 0.0
    %550 = vmatprep.subr.mxu0 0.0
    %551 = vmatpush1.msra.mxu0 0.0
    %552 = vmatprep.subr.mxu0 0.0
    %553 = vmatpush1.msra.mxu0 0.0
    %554 = vmatprep.subr.mxu0 0.0
    %555 = vmatpush1.msra.mxu0 0.0
    %556 = vmatprep.subr.mxu0 0.0
    %557 = vmatpush1.msra.mxu0 0.0
    %558 = vmatprep.subr.mxu0 0.0
    %559 = vmatpush1.msra.mxu0 0.0
    %560 = vmatprep.subr.mxu0 0.0
    %561 = vmatpush1.msra.mxu0 0.0
    %562 = vmatprep.subr.mxu0 0.0
    %563 = vmatpush1.msra.mxu0 0.0
    %564 = vmatprep.subr.mxu0 0.0
    %565 = vmatpush1.msra.mxu0 0.0
    %566 = vmatprep.subr.mxu0 0.0
    %567 = vmatpush1.msra.mxu0 0.0
    %568 = vmatprep.subr.mxu0 0.0
    %569 = vmatpush1.msra.mxu0 0.0
    %570 = vmatprep.subr.mxu0 0.0
    %571 = vmatpush1.msra.mxu0 0.0
    %572 = vmatprep.subr.mxu0 0.0
    %573 = vmatpush1.msra.mxu0 0.0
    %574 = vmatprep.subr.mxu0 0.0
    %575 = vmatpush1.msra.mxu0 0.0
    %576 = vmatprep.subr.mxu0 0.0
    %577 = vmatpush1.msra.mxu0 0.0
    %578 = vmatprep.subr.mxu0 0.0
    %579 = vmatpush1.msra.mxu0 0.0
    %580 = vmatprep.subr.mxu0 0.0
    %581 = vmatpush1.msra.mxu0 0.0
    %582 = vmatprep.subr.mxu0 0.0
    %583 = vmatpush1.msra.mxu0 0.0
    %584 = vmatprep.subr.mxu0 0.0
    %585 = vmatpush1.msra.mxu0 0.0
    %586 = vmatprep.subr.mxu0 0.0
    %587 = vmatpush1.msra.mxu0 0.0
    %588 = vmatprep.subr.mxu0 0.0
    %589 = vmatpush1.msra.mxu0 0.0
    %590 = vmatprep.subr.mxu0 0.0
    %591 = vmatpush1.msra.mxu0 0.0
    %592 = vmatprep.subr.mxu0 0.0
    %593 = vmatpush1.msra.mxu0 0.0
    %594 = vmatprep.subr.mxu0 0.0
    %595 = vmatpush1.msra.mxu0 0.0
    %596 = vmatprep.subr.mxu0 0.0
    %597 = vmatpush1.msra.mxu0 0.0
    %598 = vmatprep.subr.mxu0 0.0
    %599 = vmatpush1.msra.mxu0 0.0
    %600 = vmatprep.subr.mxu0 0.0
    %601 = vmatpush1.msra.mxu0 0.0
    %602 = vmatprep.subr.mxu0 0.0
    %603 = vmatpush1.msra.mxu0 0.0
    %604 = vmatprep.mubr.f32.mxu0 0.0
    %605 = vmatmul.mubr.f32.gmra.mrb[0].mxu0 %v529
    %v606 = vpop.f32.mrb[0].mxu0
    %v607 = vadd.f32 0.0, %v606
    %v608 = vpop.f32.mrb[0].mxu0
    %609 = vmatprep.mubr.f32.mxu0 0.0
    %610 = vmatmul.mubr.f32.gmra.mrb[0].mxu0 %v532
    %v611 = vpop.f32.mrb[0].mxu0
    %v612 = vadd.f32 0.0, %v611
    %v613 = vpop.f32.mrb[0].mxu0
    %614 = vmatprep.mubr.f32.mxu0 0.0
    %615 = vmatmul.mubr.f32.gmra.mrb[0].mxu0 %v535
    %v616 = vpop.f32.mrb[0].mxu0
    %v617 = vadd.f32 0.0, %v616
    %v618 = vpop.f32.mrb[0].mxu0
    %619 = vmatprep.mubr.f32.mxu0 0.0
    %620 = vmatmul.mubr.f32.gmra.mrb[0].mxu0 %v538
    %v621 = vpop.f32.mrb[0].mxu0
    %v622 = vadd.f32 0.0, %v621
    %v623 = vpop.f32.mrb[0].mxu0
    %624 = vdwg.mxu0
    %627 = vrot.lane.b32.xlu0 %v617, 16
    %v628 = vpop.permute.xlu0 %627
    %629 = vrot.lane.b32.xlu0 %v622, 16
    %v630 = vpop.permute.xlu0 %629
    %v633 = vsel %vm228, %v607, %v628
    %v634 = vsel %vm228, %v612, %v630
    %v635 = vlaneseq
    %v636 = vshrl.u32 %v635, 7
    %v637 = vsub.s32 1, %v636
    %v638 = vrot.slane %v44, %v637
    %643 = vrot.lane.b32.xlu0 %v256, 32
    %v644 = vpop.permute.xlu0 %643
    %645 = vrot.lane.b32.xlu0 %v258, 32
    %v646 = vpop.permute.xlu0 %645
    %647 = vrot.lane.b32.xlu0 %v260, 32
    %v648 = vpop.permute.xlu0 %647
    %649 = vrot.lane.b32.xlu0 %v262, 32
    %v650 = vpop.permute.xlu0 %649
    %v656 = vsel %vm181, %v633, 0
    %v659 = vsel %vm181, %v634, 0
    %661 = vmatprep.subr.mxu0 0.0
    %662 = vmatpush1.msra.mxu0 %v644
    %663 = vmatprep.subr.mxu0 0.0
    %664 = vmatpush1.msra.mxu0 %v646
    %665 = vmatprep.subr.mxu0 0.0
    %666 = vmatpush1.msra.mxu0 %v648
    %667 = vmatprep.subr.mxu0 0.0
    %668 = vmatpush1.msra.mxu0 %v650
    %669 = vmatprep.subr.mxu0 0.0
    %670 = vmatpush1.msra.mxu0 0.0
    %671 = vmatprep.subr.mxu0 0.0
    %672 = vmatpush1.msra.mxu0 0.0
    %673 = vmatprep.subr.mxu0 0.0
    %674 = vmatpush1.msra.mxu0 0.0
    %675 = vmatprep.subr.mxu0 0.0
    %676 = vmatpush1.msra.mxu0 0.0
    %677 = vmatprep.subr.mxu0 0.0
    %678 = vmatpush1.msra.mxu0 0.0
    %679 = vmatprep.subr.mxu0 0.0
    %680 = vmatpush1.msra.mxu0 0.0
    %681 = vmatprep.subr.mxu0 0.0
    %682 = vmatpush1.msra.mxu0 0.0
    %683 = vmatprep.subr.mxu0 0.0
    %684 = vmatpush1.msra.mxu0 0.0
    %685 = vmatprep.subr.mxu0 0.0
    %686 = vmatpush1.msra.mxu0 0.0
    %687 = vmatprep.subr.mxu0 0.0
    %688 = vmatpush1.msra.mxu0 0.0
    %689 = vmatprep.subr.mxu0 0.0
    %690 = vmatpush1.msra.mxu0 0.0
    %691 = vmatprep.subr.mxu0 0.0
    %692 = vmatpush1.msra.mxu0 0.0
    %693 = vmatprep.subr.mxu0 0.0
    %694 = vmatpush1.msra.mxu0 0.0
    %695 = vmatprep.subr.mxu0 0.0
    %696 = vmatpush1.msra.mxu0 0.0
    %697 = vmatprep.subr.mxu0 0.0
    %698 = vmatpush1.msra.mxu0 0.0
    %699 = vmatprep.subr.mxu0 0.0
    %700 = vmatpush1.msra.mxu0 0.0
    %701 = vmatprep.subr.mxu0 0.0
    %702 = vmatpush1.msra.mxu0 0.0
    %703 = vmatprep.subr.mxu0 0.0
    %704 = vmatpush1.msra.mxu0 0.0
    %705 = vmatprep.subr.mxu0 0.0
    %706 = vmatpush1.msra.mxu0 0.0
    %707 = vmatprep.subr.mxu0 0.0
    %708 = vmatpush1.msra.mxu0 0.0
    %709 = vmatprep.subr.mxu0 0.0
    %710 = vmatpush1.msra.mxu0 0.0
    %711 = vmatprep.subr.mxu0 0.0
    %712 = vmatpush1.msra.mxu0 0.0
    %713 = vmatprep.subr.mxu0 0.0
    %714 = vmatpush1.msra.mxu0 0.0
    %715 = vmatprep.subr.mxu0 0.0
    %716 = vmatpush1.msra.mxu0 0.0
    %717 = vmatprep.subr.mxu0 0.0
    %718 = vmatpush1.msra.mxu0 0.0
    %719 = vmatprep.subr.mxu0 0.0
    %720 = vmatpush1.msra.mxu0 0.0
    %721 = vmatprep.subr.mxu0 0.0
    %722 = vmatpush1.msra.mxu0 0.0
    %723 = vmatprep.subr.mxu0 0.0
    %724 = vmatpush1.msra.mxu0 0.0
    %725 = vmatprep.mubr.f32.mxu0 0.0
    %726 = vmatmul.mubr.f32.gmra.mrb[0].mxu0 %v656
    %v727 = vpop.f32.mrb[0].mxu0
    %v728 = vadd.f32 %v638, %v727
    %v729 = vpop.f32.mrb[0].mxu0
    %730 = vmatprep.mubr.f32.mxu0 0.0
    %731 = vmatmul.mubr.f32.gmra.mrb[0].mxu0 %v659
    %v732 = vpop.f32.mrb[0].mxu0
    %v733 = vadd.f32 %v638, %v732
    %v734 = vpop.f32.mrb[0].mxu0
    %735 = vdwg.mxu0
    %v736 = vadd.f32 %v728, %v219
    %v737 = vadd.f32 %v733, %v220
    %v738 = vsel %vm181, %v736, 0.0
    %739 = vadd.xlane.f32.xlu0 %v738
    %v740 = vpop.xlane.xlu0 %739
    %v741 = vsel %vm181, %v737, 0.0
    %742 = vadd.xlane.f32.xlu0 %v741
    %v743 = vpop.xlane.xlu0 %742
    %v744 = vmul.f32 %v740, %v188
    %v745 = vmul.f32 %v743, %v188
    %v746 = vsub.f32 %v736, %v744
    %v747 = vsub.f32 %v737, %v745
    %v748 = vmul.f32 %v746, %v746
    %v749 = vmul.f32 %v747, %v747
    %v750 = vsel %vm181, %v748, 0.0
    %751 = vadd.xlane.f32.xlu0 %v750
    %v752 = vpop.xlane.xlu0 %751
    %v753 = vsel %vm181, %v749, 0.0
    %754 = vadd.xlane.f32.xlu0 %v753
    %v755 = vpop.xlane.xlu0 %754
    %v756 = vmul.f32 %v752, %v188
    %v757 = vmul.f32 %v755, %v188
    %v758 = vadd.f32 %v756, 1e-12
    %v759 = vadd.f32 %v757, 1e-12
    %v760 = vrsqrt.pop %v758
    %v761 = vrsqrt.pop %v759
    %v762 = vmul.f32 %v746, %v760
    %v763 = vmul.f32 %v747, %v761
    %v764 = vlaneseq
    %v765 = vshrl.u32 %v764, 7
    %v766 = vsub.s32 2, %v765
    %v767 = vrot.slane %v44, %v766
    %v768 = vmul.f32 %v762, %v767
    %v769 = vmul.f32 %v763, %v767
    %v770 = vlaneseq
    %v771 = vshrl.u32 %v770, 7
    %v772 = vsub.s32 3, %v771
    %v773 = vrot.slane %v44, %v772
    %v774 = vadd.f32 %v768, %v773
    %v775 = vadd.f32 %v769, %v773
    %v776 = vlaneseq
    %v777 = vshrl.u32 %v776, 7
    %v778 = vsub.s32 4, %v777
    %v779 = vrot.slane %v44, %v778
    %v781 = vsel %vm181, %v774, 0
    %v784 = vsel %vm181, %v775, 0
    %786 = vmatprep.subr.mxu0 0.0
    %787 = vmatpush1.msra.mxu0 %v257
    %788 = vmatprep.subr.mxu0 0.0
    %789 = vmatpush1.msra.mxu0 %v259
    %790 = vmatprep.subr.mxu0 0.0
    %791 = vmatpush1.msra.mxu0 %v261
    %792 = vmatprep.subr.mxu0 0.0
    %793 = vmatpush1.msra.mxu0 %v263
    %794 = vmatprep.subr.mxu0 0.0
    %795 = vmatpush1.msra.mxu0 0.0
    %796 = vmatprep.subr.mxu0 0.0
    %797 = vmatpush1.msra.mxu0 0.0
    %798 = vmatprep.subr.mxu0 0.0
    %799 = vmatpush1.msra.mxu0 0.0
    %800 = vmatprep.subr.mxu0 0.0
    %801 = vmatpush1.msra.mxu0 0.0
    %802 = vmatprep.subr.mxu0 0.0
    %803 = vmatpush1.msra.mxu0 0.0
    %804 = vmatprep.subr.mxu0 0.0
    %805 = vmatpush1.msra.mxu0 0.0
    %806 = vmatprep.subr.mxu0 0.0
    %807 = vmatpush1.msra.mxu0 0.0
    %808 = vmatprep.subr.mxu0 0.0
    %809 = vmatpush1.msra.mxu0 0.0
    %810 = vmatprep.subr.mxu0 0.0
    %811 = vmatpush1.msra.mxu0 0.0
    %812 = vmatprep.subr.mxu0 0.0
    %813 = vmatpush1.msra.mxu0 0.0
    %814 = vmatprep.subr.mxu0 0.0
    %815 = vmatpush1.msra.mxu0 0.0
    %816 = vmatprep.subr.mxu0 0.0
    %817 = vmatpush1.msra.mxu0 0.0
    %818 = vmatprep.subr.mxu0 0.0
    %819 = vmatpush1.msra.mxu0 0.0
    %820 = vmatprep.subr.mxu0 0.0
    %821 = vmatpush1.msra.mxu0 0.0
    %822 = vmatprep.subr.mxu0 0.0
    %823 = vmatpush1.msra.mxu0 0.0
    %824 = vmatprep.subr.mxu0 0.0
    %825 = vmatpush1.msra.mxu0 0.0
    %826 = vmatprep.subr.mxu0 0.0
    %827 = vmatpush1.msra.mxu0 0.0
    %828 = vmatprep.subr.mxu0 0.0
    %829 = vmatpush1.msra.mxu0 0.0
    %830 = vmatprep.subr.mxu0 0.0
    %831 = vmatpush1.msra.mxu0 0.0
    %832 = vmatprep.subr.mxu0 0.0
    %833 = vmatpush1.msra.mxu0 0.0
    %834 = vmatprep.subr.mxu0 0.0
    %835 = vmatpush1.msra.mxu0 0.0
    %836 = vmatprep.subr.mxu0 0.0
    %837 = vmatpush1.msra.mxu0 0.0
    %838 = vmatprep.subr.mxu0 0.0
    %839 = vmatpush1.msra.mxu0 0.0
    %840 = vmatprep.subr.mxu0 0.0
    %841 = vmatpush1.msra.mxu0 0.0
    %842 = vmatprep.subr.mxu0 0.0
    %843 = vmatpush1.msra.mxu0 0.0
    %844 = vmatprep.subr.mxu0 0.0
    %845 = vmatpush1.msra.mxu0 0.0
    %846 = vmatprep.subr.mxu0 0.0
    %847 = vmatpush1.msra.mxu0 0.0
    %848 = vmatprep.subr.mxu0 0.0
    %849 = vmatpush1.msra.mxu0 0.0
    %850 = vmatprep.mubr.f32.mxu0 0.0
    %851 = vmatmul.mubr.f32.gmra.mrb[0].mxu0 %v781
    %v852 = vpop.f32.mrb[0].mxu0
    %v853 = vadd.f32 %v779, %v852
    %v854 = vpop.f32.mrb[0].mxu0
    %855 = vmatprep.mubr.f32.mxu0 0.0
    %856 = vmatmul.mubr.f32.gmra.mrb[0].mxu0 %v784
    %v857 = vpop.f32.mrb[0].mxu0
    %v858 = vadd.f32 %v779, %v857
    %v859 = vpop.f32.mrb[0].mxu0
    %860 = vdwg.mxu0
    %v861 = vmul.f32 %v853, 0.5
    %v862 = vmul.f32 %v858, 0.5
    %v863 = vmul.f32 %v853, 0.044715
    %v864 = vmul.f32 %v858, 0.044715
    %v865 = vmul.f32 %v863, %v853
    %v866 = vmul.f32 %v864, %v858
    %v867 = vmul.f32 %v865, %v853
    %v868 = vmul.f32 %v866, %v858
    %v869 = vadd.f32 %v853, %v867
    %v870 = vadd.f32 %v858, %v868
    %v871 = vmul.f32 %v869, 0.7978846
    %v872 = vmul.f32 %v870, 0.7978846
    %v873 = vtanh.pop %v871
    %v874 = vtanh.pop %v872
    %v875 = vadd.f32 %v873, 1.0
    %v876 = vadd.f32 %v874, 1.0
    %v877 = vmul.f32 %v861, %v875
    %v878 = vmul.f32 %v862, %v876
    %v879 = vlaneseq
    %v880 = vshrl.u32 %v879, 7
    %v881 = vsub.s32 5, %v880
    %v882 = vrot.slane %v44, %v881
    %887 = vrot.lane.b32.xlu0 %v257, 64
    %v888 = vpop.permute.xlu0 %887
    %889 = vrot.lane.b32.xlu0 %v259, 64
    %v890 = vpop.permute.xlu0 %889
    %891 = vrot.lane.b32.xlu0 %v261, 64
    %v892 = vpop.permute.xlu0 %891
    %893 = vrot.lane.b32.xlu0 %v263, 64
    %v894 = vpop.permute.xlu0 %893
    %vm895 = vcmask 523264
    %v897 = vsel %vm895, %v877, 0
    %v900 = vsel %vm895, %v878, 0
    %v902 = vsel %vm895, %v888, 0
    %v904 = vsel %vm895, %v890, 0
    %v906 = vsel %vm895, %v892, 0
    %v908 = vsel %vm895, %v894, 0
    %910 = vmatprep.subr.mxu0 0.0
    %911 = vmatpush1.xpose.msra.mxu0 %v902
    %912 = vmatprep.subr.mxu0 0.0
    %913 = vmatpush1.xpose.msra.mxu0 %v904
    %914 = vmatprep.subr.mxu0 0.0
    %915 = vmatpush1.xpose.msra.mxu0 %v906
    %916 = vmatprep.subr.mxu0 0.0
    %917 = vmatpush1.xpose.msra.mxu0 %v908
    %918 = vmatprep.subr.mxu0 0.0
    %919 = vmatpush1.xpose.msra.mxu0 0.0
    %920 = vmatprep.subr.mxu0 0.0
    %921 = vmatpush1.xpose.msra.mxu0 0.0
    %922 = vmatprep.subr.mxu0 0.0
    %923 = vmatpush1.xpose.msra.mxu0 0.0
    %924 = vmatprep.subr.mxu0 0.0
    %925 = vmatpush1.xpose.msra.mxu0 0.0
    %926 = vmatprep.subr.mxu0 0.0
    %927 = vmatpush1.xpose.msra.mxu0 0.0
    %928 = vmatprep.subr.mxu0 0.0
    %929 = vmatpush1.xpose.msra.mxu0 0.0
    %930 = vmatprep.subr.mxu0 0.0
    %931 = vmatpush1.xpose.msra.mxu0 0.0
    %932 = vmatprep.subr.mxu0 0.0
    %933 = vmatpush1.xpose.msra.mxu0 0.0
    %934 = vmatprep.subr.mxu0 0.0
    %935 = vmatpush1.xpose.msra.mxu0 0.0
    %936 = vmatprep.subr.mxu0 0.0
    %937 = vmatpush1.xpose.msra.mxu0 0.0
    %938 = vmatprep.subr.mxu0 0.0
    %939 = vmatpush1.xpose.msra.mxu0 0.0
    %940 = vmatprep.subr.mxu0 0.0
    %941 = vmatpush1.xpose.msra.mxu0 0.0
    %942 = vmatprep.subr.mxu0 0.0
    %943 = vmatpush1.xpose.msra.mxu0 0.0
    %944 = vmatprep.subr.mxu0 0.0
    %945 = vmatpush1.xpose.msra.mxu0 0.0
    %946 = vmatprep.subr.mxu0 0.0
    %947 = vmatpush1.xpose.msra.mxu0 0.0
    %948 = vmatprep.subr.mxu0 0.0
    %949 = vmatpush1.xpose.msra.mxu0 0.0
    %950 = vmatprep.subr.mxu0 0.0
    %951 = vmatpush1.xpose.msra.mxu0 0.0
    %952 = vmatprep.subr.mxu0 0.0
    %953 = vmatpush1.xpose.msra.mxu0 0.0
    %954 = vmatprep.subr.mxu0 0.0
    %955 = vmatpush1.xpose.msra.mxu0 0.0
    %956 = vmatprep.subr.mxu0 0.0
    %957 = vmatpush1.xpose.msra.mxu0 0.0
    %958 = vmatprep.subr.mxu0 0.0
    %959 = vmatpush1.xpose.msra.mxu0 0.0
    %960 = vmatprep.subr.mxu0 0.0
    %961 = vmatpush1.xpose.msra.mxu0 0.0
    %962 = vmatprep.subr.mxu0 0.0
    %963 = vmatpush1.xpose.msra.mxu0 0.0
    %964 = vmatprep.subr.mxu0 0.0
    %965 = vmatpush1.xpose.msra.mxu0 0.0
    %966 = vmatprep.subr.mxu0 0.0
    %967 = vmatpush1.xpose.msra.mxu0 0.0
    %968 = vmatprep.subr.mxu0 0.0
    %969 = vmatpush1.xpose.msra.mxu0 0.0
    %970 = vmatprep.subr.mxu0 0.0
    %971 = vmatpush1.xpose.msra.mxu0 0.0
    %972 = vmatprep.subr.mxu0 0.0
    %973 = vmatpush1.xpose.msra.mxu0 0.0
    %974 = vmatprep.mubr.f32.mxu0 0.0
    %975 = vmatmul.mubr.f32.gmra.mrb[0].mxu0 %v897
    %v976 = vpop.f32.mrb[0].mxu0
    %v977 = vadd.f32 %v882, %v976
    %v978 = vpop.f32.mrb[0].mxu0
    %979 = vmatprep.mubr.f32.mxu0 0.0
    %980 = vmatmul.mubr.f32.gmra.mrb[0].mxu0 %v900
    %v981 = vpop.f32.mrb[0].mxu0
    %v982 = vadd.f32 %v882, %v981
    %v983 = vpop.f32.mrb[0].mxu0
    %984 = vdwg.mxu0
    %v985 = vadd.f32 %v977, %v774
    %v986 = vadd.f32 %v982, %v775
    %v987 = vsel %vm181, %v985, 0.0
    %988 = vadd.xlane.f32.xlu0 %v987
    %v989 = vpop.xlane.xlu0 %988
    %v990 = vsel %vm181, %v986, 0.0
    %991 = vadd.xlane.f32.xlu0 %v990
    %v992 = vpop.xlane.xlu0 %991
    %v993 = vmul.f32 %v989, %v188
    %v994 = vmul.f32 %v992, %v188
    %v995 = vsub.f32 %v985, %v993
    %v996 = vsub.f32 %v986, %v994
    %v997 = vmul.f32 %v995, %v995
    %v998 = vmul.f32 %v996, %v996
    %v999 = vsel %vm181, %v997, 0.0
    %1000 = vadd.xlane.f32.xlu0 %v999
    %v1001 = vpop.xlane.xlu0 %1000
    %v1002 = vsel %vm181, %v998, 0.0
    %1003 = vadd.xlane.f32.xlu0 %v1002
    %v1004 = vpop.xlane.xlu0 %1003
    %v1005 = vmul.f32 %v1001, %v188
    %v1006 = vmul.f32 %v1004, %v188
    %v1007 = vadd.f32 %v1005, 1e-12
    %v1008 = vadd.f32 %v1006, 1e-12
    %v1009 = vrsqrt.pop %v1007
    %v1010 = vrsqrt.pop %v1008
    %v1011 = vmul.f32 %v995, %v1009
    %v1012 = vmul.f32 %v996, %v1010
    %v1013 = vlaneseq
    %v1014 = vshrl.u32 %v1013, 7
    %v1015 = vsub.s32 6, %v1014
    %v1016 = vrot.slane %v44, %v1015
    %v1017 = vmul.f32 %v1011, %v1016
    %v1018 = vmul.f32 %v1012, %v1016
    %v1019 = vlaneseq
    %v1020 = vshrl.u32 %v1019, 7
    %v1021 = vsub.s32 7, %v1020
    %v1022 = vrot.slane %v44, %v1021
    %v1023 = vadd.f32 %v1017, %v1022
    %v1024 = vadd.f32 %v1018, %v1022
    %s1025 = scalar_lea.vmem [#allocation2], 64
    %v1026 = vld [vmem:[%s1025] sm:$0xff]
    %v1027 = vld [vmem:[%s1025 + $0x8] sm:$0xff]
    %v1028 = vld [vmem:[%s1025 + $0x10] sm:$0xff]
    %v1029 = vld [vmem:[%s1025 + $0x18] sm:$0xff]
    %v1030 = vld [vmem:[%s1025 + $0x20] sm:$0xff]
    %v1031 = vld [vmem:[%s1025 + $0x28] sm:$0xff]
    %v1032 = vld [vmem:[%s1025 + $0x30] sm:$0xff]
    %v1033 = vld [vmem:[%s1025 + $0x38] sm:$0xff]
    %v1034 = vlaneseq
    %v1035 = vshrl.u32 %v1034, 7
    %v1036 = vsub.s32 0, %v1035
    %v1037 = vrot.slane %v45, %v1036
    %v1039 = vsel %vm181, %v1023, 0
    %v1042 = vsel %vm181, %v1024, 0
    %1044 = vmatprep.subr.mxu0 0.0
    %1045 = vmatpush1.msra.mxu0 %v1026
    %1046 = vmatprep.subr.mxu0 0.0
    %1047 = vmatpush1.msra.mxu0 %v1028
    %1048 = vmatprep.subr.mxu0 0.0
    %1049 = vmatpush1.msra.mxu0 %v1030
    %1050 = vmatprep.subr.mxu0 0.0
    %1051 = vmatpush1.msra.mxu0 %v1032
    %1052 = vmatprep.subr.mxu0 0.0
    %1053 = vmatpush1.msra.mxu0 0.0
    %1054 = vmatprep.subr.mxu0 0.0
    %1055 = vmatpush1.msra.mxu0 0.0
    %1056 = vmatprep.subr.mxu0 0.0
    %1057 = vmatpush1.msra.mxu0 0.0
    %1058 = vmatprep.subr.mxu0 0.0
    %1059 = vmatpush1.msra.mxu0 0.0
    %1060 = vmatprep.subr.mxu0 0.0
    %1061 = vmatpush1.msra.mxu0 0.0
    %1062 = vmatprep.subr.mxu0 0.0
    %1063 = vmatpush1.msra.mxu0 0.0
    %1064 = vmatprep.subr.mxu0 0.0
    %1065 = vmatpush1.msra.mxu0 0.0
    %1066 = vmatprep.subr.mxu0 0.0
    %1067 = vmatpush1.msra.mxu0 0.0
    %1068 = vmatprep.subr.mxu0 0.0
    %1069 = vmatpush1.msra.mxu0 0.0
    %1070 = vmatprep.subr.mxu0 0.0
    %1071 = vmatpush1.msra.mxu0 0.0
    %1072 = vmatprep.subr.mxu0 0.0
    %1073 = vmatpush1.msra.mxu0 0.0
    %1074 = vmatprep.subr.mxu0 0.0
    %1075 = vmatpush1.msra.mxu0 0.0
    %1076 = vmatprep.subr.mxu0 0.0
    %1077 = vmatpush1.msra.mxu0 0.0
    %1078 = vmatprep.subr.mxu0 0.0
    %1079 = vmatpush1.msra.mxu0 0.0
    %1080 = vmatprep.subr.mxu0 0.0
    %1081 = vmatpush1.msra.mxu0 0.0
    %1082 = vmatprep.subr.mxu0 0.0
    %1083 = vmatpush1.msra.mxu0 0.0
    %1084 = vmatprep.subr.mxu0 0.0
    %1085 = vmatpush1.msra.mxu0 0.0
    %1086 = vmatprep.subr.mxu0 0.0
    %1087 = vmatpush1.msra.mxu0 0.0
    %1088 = vmatprep.subr.mxu0 0.0
    %1089 = vmatpush1.msra.mxu0 0.0
    %1090 = vmatprep.subr.mxu0 0.0
    %1091 = vmatpush1.msra.mxu0 0.0
    %1092 = vmatprep.subr.mxu0 0.0
    %1093 = vmatpush1.msra.mxu0 0.0
    %1094 = vmatprep.subr.mxu0 0.0
    %1095 = vmatpush1.msra.mxu0 0.0
    %1096 = vmatprep.subr.mxu0 0.0
    %1097 = vmatpush1.msra.mxu0 0.0
    %1098 = vmatprep.subr.mxu0 0.0
    %1099 = vmatpush1.msra.mxu0 0.0
    %1100 = vmatprep.subr.mxu0 0.0
    %1101 = vmatpush1.msra.mxu0 0.0
    %1102 = vmatprep.subr.mxu0 0.0
    %1103 = vmatpush1.msra.mxu0 0.0
    %1104 = vmatprep.subr.mxu0 0.0
    %1105 = vmatpush1.msra.mxu0 0.0
    %1106 = vmatprep.subr.mxu0 0.0
    %1107 = vmatpush1.msra.mxu0 0.0
    %1108 = vmatprep.mubr.f32.mxu0 0.0
    %1109 = vmatmul.mubr.f32.gmra.mrb[0].mxu0 %v1039
    %v1110 = vpop.f32.mrb[0].mxu0
    %v1111 = vadd.f32 %v1037, %v1110
    %v1112 = vpop.f32.mrb[0].mxu0
    %1113 = vmatprep.mubr.f32.mxu0 0.0
    %1114 = vmatmul.mubr.f32.gmra.mrb[0].mxu0 %v1042
    %v1115 = vpop.f32.mrb[0].mxu0
    %v1116 = vadd.f32 %v1037, %v1115
    %v1117 = vpop.f32.mrb[0].mxu0
    %1118 = vdwg.mxu0
    %1121 = vrot.lane.b32.xlu0 %v1111, 112
    %v1122 = vpop.permute.xlu0 %1121
    %1123 = vrot.lane.b32.xlu0 %v1116, 112
    %v1124 = vpop.permute.xlu0 %1123
    %1125 = vrot.lane.b32.xlu0 %v1111, 96
    %v1126 = vpop.permute.xlu0 %1125
    %1127 = vrot.lane.b32.xlu0 %v1116, 96
    %v1128 = vpop.permute.xlu0 %1127
    %1129 = vrot.lane.b32.xlu0 %v1122, 96
    %v1130 = vpop.permute.xlu0 %1129
    %1131 = vrot.lane.b32.xlu0 %v1124, 96
    %v1132 = vpop.permute.xlu0 %1131
    %v1133 = vsel %vm228, %v1111, 0
    %v1135 = vsel %vm228, %v1116, 0
    %v1137 = vsel %vm228, %v1122, 0
    %v1139 = vsel %vm228, %v1124, 0
    %v1141 = vsel %vm228, %v1126, 0
    %v1143 = vsel %vm228, %v1128, 0
    %v1145 = vsel %vm228, %v1130, 0
    %v1147 = vsel %vm228, %v1132, 0
    %1149 = vmatprep.subr.mxu0 0.0
    %1150 = vmatpush1.xpose.msra.mxu0 %v1141
    %1151 = vmatprep.subr.mxu0 0.0
    %1152 = vmatpush1.xpose.msra.mxu0 %v1143
    %1153 = vmatprep.subr.mxu0 0.0
    %1154 = vmatpush1.xpose.msra.mxu0 %v1145
    %1155 = vmatprep.subr.mxu0 0.0
    %1156 = vmatpush1.xpose.msra.mxu0 %v1147
    %1157 = vmatprep.subr.mxu0 0.0
    %1158 = vmatpush1.xpose.msra.mxu0 0.0
    %1159 = vmatprep.subr.mxu0 0.0
    %1160 = vmatpush1.xpose.msra.mxu0 0.0
    %1161 = vmatprep.subr.mxu0 0.0
    %1162 = vmatpush1.xpose.msra.mxu0 0.0
    %1163 = vmatprep.subr.mxu0 0.0
    %1164 = vmatpush1.xpose.msra.mxu0 0.0
    %1165 = vmatprep.subr.mxu0 0.0
    %1166 = vmatpush1.xpose.msra.mxu0 0.0
    %1167 = vmatprep.subr.mxu0 0.0
    %1168 = vmatpush1.xpose.msra.mxu0 0.0
    %1169 = vmatprep.subr.mxu0 0.0
    %1170 = vmatpush1.xpose.msra.mxu0 0.0
    %1171 = vmatprep.subr.mxu0 0.0
    %1172 = vmatpush1.xpose.msra.mxu0 0.0
    %1173 = vmatprep.subr.mxu0 0.0
    %1174 = vmatpush1.xpose.msra.mxu0 0.0
    %1175 = vmatprep.subr.mxu0 0.0
    %1176 = vmatpush1.xpose.msra.mxu0 0.0
    %1177 = vmatprep.subr.mxu0 0.0
    %1178 = vmatpush1.xpose.msra.mxu0 0.0
    %1179 = vmatprep.subr.mxu0 0.0
    %1180 = vmatpush1.xpose.msra.mxu0 0.0
    %1181 = vmatprep.subr.mxu0 0.0
    %1182 = vmatpush1.xpose.msra.mxu0 0.0
    %1183 = vmatprep.subr.mxu0 0.0
    %1184 = vmatpush1.xpose.msra.mxu0 0.0
    %1185 = vmatprep.subr.mxu0 0.0
    %1186 = vmatpush1.xpose.msra.mxu0 0.0
    %1187 = vmatprep.subr.mxu0 0.0
    %1188 = vmatpush1.xpose.msra.mxu0 0.0
    %1189 = vmatprep.subr.mxu0 0.0
    %1190 = vmatpush1.xpose.msra.mxu0 0.0
    %1191 = vmatprep.subr.mxu0 0.0
    %1192 = vmatpush1.xpose.msra.mxu0 0.0
    %1193 = vmatprep.subr.mxu0 0.0
    %1194 = vmatpush1.xpose.msra.mxu0 0.0
    %1195 = vmatprep.subr.mxu0 0.0
    %1196 = vmatpush1.xpose.msra.mxu0 0.0
    %1197 = vmatprep.subr.mxu0 0.0
    %1198 = vmatpush1.xpose.msra.mxu0 0.0
    %1199 = vmatprep.subr.mxu0 0.0
    %1200 = vmatpush1.xpose.msra.mxu0 0.0
    %1201 = vmatprep.subr.mxu0 0.0
    %1202 = vmatpush1.xpose.msra.mxu0 0.0
    %1203 = vmatprep.subr.mxu0 0.0
    %1204 = vmatpush1.xpose.msra.mxu0 0.0
    %1205 = vmatprep.subr.mxu0 0.0
    %1206 = vmatpush1.xpose.msra.mxu0 0.0
    %1207 = vmatprep.subr.mxu0 0.0
    %1208 = vmatpush1.xpose.msra.mxu0 0.0
    %1209 = vmatprep.subr.mxu0 0.0
    %1210 = vmatpush1.xpose.msra.mxu0 0.0
    %1211 = vmatprep.subr.mxu0 0.0
    %1212 = vmatpush1.xpose.msra.mxu0 0.0
    %1213 = vmatprep.mubr.f32.mxu0 0.0
    %1214 = vmatmul.mubr.f32.gmra.mrb[0].mxu0 %v1133
    %v1215 = vpop.f32.mrb[0].mxu0
    %v1216 = vadd.f32 0.0, %v1215
    %v1217 = vpop.f32.mrb[0].mxu0
    %1218 = vmatprep.mubr.f32.mxu0 0.0
    %1219 = vmatmul.mubr.f32.gmra.mrb[0].mxu0 %v1135
    %v1220 = vpop.f32.mrb[0].mxu0
    %v1221 = vadd.f32 0.0, %v1220
    %v1222 = vpop.f32.mrb[0].mxu0
    %1223 = vmatprep.mubr.f32.mxu0 0.0
    %1224 = vmatmul.mubr.f32.gmra.mrb[0].mxu0 %v1137
    %v1225 = vpop.f32.mrb[0].mxu0
    %v1226 = vadd.f32 0.0, %v1225
    %v1227 = vpop.f32.mrb[0].mxu0
    %1228 = vmatprep.mubr.f32.mxu0 0.0
    %1229 = vmatmul.mubr.f32.gmra.mrb[0].mxu0 %v1139
    %v1230 = vpop.f32.mrb[0].mxu0
    %v1231 = vadd.f32 0.0, %v1230
    %v1232 = vpop.f32.mrb[0].mxu0
    %1233 = vdwg.mxu0
    %v1234 = vmul.f32 %v1216, 0.25
    %v1235 = vmul.f32 %v1221, 0.25
    %v1236 = vmul.f32 %v1226, 0.25
    %v1237 = vmul.f32 %v1231, 0.25
    %v1238 = vadd.f32 %v1234, %v252
    %v1239 = vadd.f32 %v1235, %v253
    %v1240 = vadd.f32 %v1236, %v254
    %v1241 = vadd.f32 %v1237, %v255
    %v1242 = vsel %vm181, %v1238, -inf
    %1243 = vmax.xlane.f32.xlu0 %v1242
    %v1244 = vpop.xlane.xlu0 %1243
    %v1245 = vsel %vm181, %v1239, -inf
    %1246 = vmax.xlane.f32.xlu0 %v1245
    %v1247 = vpop.xlane.xlu0 %1246
    %v1248 = vsel %vm181, %v1240, -inf
    %1249 = vmax.xlane.f32.xlu0 %v1248
    %v1250 = vpop.xlane.xlu0 %1249
    %v1251 = vsel %vm181, %v1241, -inf
    %1252 = vmax.xlane.f32.xlu0 %v1251
    %v1253 = vpop.xlane.xlu0 %1252
    %v1254 = vsub.f32 %v1238, %v1244
    %v1255 = vsub.f32 %v1239, %v1247
    %v1256 = vsub.f32 %v1240, %v1250
    %v1257 = vsub.f32 %v1241, %v1253
    %v1258 = vmul.f32 %v1254, 1.442695
    %v1259 = vpow.pop %v1258
    %v1260 = vmul.f32 %v1255, 1.442695
    %v1261 = vpow.pop %v1260
    %v1262 = vmul.f32 %v1256, 1.442695
    %v1263 = vpow.pop %v1262
    %v1264 = vmul.f32 %v1257, 1.442695
    %v1265 = vpow.pop %v1264
    %v1266 = vsel %vm181, %v1259, 0.0
    %1267 = vadd.xlane.f32.xlu0 %v1266
    %v1268 = vpop.xlane.xlu0 %1267
    %v1269 = vsel %vm181, %v1261, 0.0
    %1270 = vadd.xlane.f32.xlu0 %v1269
    %v1271 = vpop.xlane.xlu0 %1270
    %v1272 = vsel %vm181, %v1263, 0.0
    %1273 = vadd.xlane.f32.xlu0 %v1272
    %v1274 = vpop.xlane.xlu0 %1273
    %v1275 = vsel %vm181, %v1265, 0.0
    %1276 = vadd.xlane.f32.xlu0 %v1275
    %v1277 = vpop.xlane.xlu0 %1276
    %v1278 = vrcp.pop %v1268
    %v1279 = vmul.f32 %v1259, %v1278
    %v1280 = vrcp.pop %v1271
    %v1281 = vmul.f32 %v1261, %v1280
    %v1282 = vrcp.pop %v1274
    %v1283 = vmul.f32 %v1263, %v1282
    %v1284 = vrcp.pop %v1277
    %v1285 = vmul.f32 %v1265, %v1284
    %1286 = vrot.lane.b32.xlu0 %v1111, 64
    %v1287 = vpop.permute.xlu0 %1286
    %1288 = vrot.lane.b32.xlu0 %v1116, 64
    %v1289 = vpop.permute.xlu0 %1288
    %1290 = vrot.lane.b32.xlu0 %v1122, 64
    %v1291 = vpop.permute.xlu0 %1290
    %1292 = vrot.lane.b32.xlu0 %v1124, 64
    %v1293 = vpop.permute.xlu0 %1292
    %v1299 = vsel %vm181, %v1279, 0
    %v1302 = vsel %vm181, %v1281, 0
    %v1305 = vsel %vm181, %v1283, 0
    %v1308 = vsel %vm181, %v1285, 0
    %1310 = vmatprep.subr.mxu0 0.0
    %1311 = vmatpush1.msra.mxu0 %v1287
    %1312 = vmatprep.subr.mxu0 0.0
    %1313 = vmatpush1.msra.mxu0 %v1289
    %1314 = vmatprep.subr.mxu0 0.0
    %1315 = vmatpush1.msra.mxu0 %v1291
    %1316 = vmatprep.subr.mxu0 0.0
    %1317 = vmatpush1.msra.mxu0 %v1293
    %1318 = vmatprep.subr.mxu0 0.0
    %1319 = vmatpush1.msra.mxu0 0.0
    %1320 = vmatprep.subr.mxu0 0.0
    %1321 = vmatpush1.msra.mxu0 0.0
    %1322 = vmatprep.subr.mxu0 0.0
    %1323 = vmatpush1.msra.mxu0 0.0
    %1324 = vmatprep.subr.mxu0 0.0
    %1325 = vmatpush1.msra.mxu0 0.0
    %1326 = vmatprep.subr.mxu0 0.0
    %1327 = vmatpush1.msra.mxu0 0.0
    %1328 = vmatprep.subr.mxu0 0.0
    %1329 = vmatpush1.msra.mxu0 0.0
    %1330 = vmatprep.subr.mxu0 0.0
    %1331 = vmatpush1.msra.mxu0 0.0
    %1332 = vmatprep.subr.mxu0 0.0
    %1333 = vmatpush1.msra.mxu0 0.0
    %1334 = vmatprep.subr.mxu0 0.0
    %1335 = vmatpush1.msra.mxu0 0.0
    %1336 = vmatprep.subr.mxu0 0.0
    %1337 = vmatpush1.msra.mxu0 0.0
    %1338 = vmatprep.subr.mxu0 0.0
    %1339 = vmatpush1.msra.mxu0 0.0
    %1340 = vmatprep.subr.mxu0 0.0
    %1341 = vmatpush1.msra.mxu0 0.0
    %1342 = vmatprep.subr.mxu0 0.0
    %1343 = vmatpush1.msra.mxu0 0.0
    %1344 = vmatprep.subr.mxu0 0.0
    %1345 = vmatpush1.msra.mxu0 0.0
    %1346 = vmatprep.subr.mxu0 0.0
    %1347 = vmatpush1.msra.mxu0 0.0
    %1348 = vmatprep.subr.mxu0 0.0
    %1349 = vmatpush1.msra.mxu0 0.0
    %1350 = vmatprep.subr.mxu0 0.0
    %1351 = vmatpush1.msra.mxu0 0.0
    %1352 = vmatprep.subr.mxu0 0.0
    %1353 = vmatpush1.msra.mxu0 0.0
    %1354 = vmatprep.subr.mxu0 0.0
    %1355 = vmatpush1.msra.mxu0 0.0
    %1356 = vmatprep.subr.mxu0 0.0
    %1357 = vmatpush1.msra.mxu0 0.0
    %1358 = vmatprep.subr.mxu0 0.0
    %1359 = vmatpush1.msra.mxu0 0.0
    %1360 = vmatprep.subr.mxu0 0.0
    %1361 = vmatpush1.msra.mxu0 0.0
    %1362 = vmatprep.subr.mxu0 0.0
    %1363 = vmatpush1.msra.mxu0 0.0
    %1364 = vmatprep.subr.mxu0 0.0
    %1365 = vmatpush1.msra.mxu0 0.0
    %1366 = vmatprep.subr.mxu0 0.0
    %1367 = vmatpush1.msra.mxu0 0.0
    %1368 = vmatprep.subr.mxu0 0.0
    %1369 = vmatpush1.msra.mxu0 0.0
    %1370 = vmatprep.subr.mxu0 0.0
    %1371 = vmatpush1.msra.mxu0 0.0
    %1372 = vmatprep.subr.mxu0 0.0
    %1373 = vmatpush1.msra.mxu0 0.0
    %1374 = vmatprep.mubr.f32.mxu0 0.0
    %1375 = vmatmul.mubr.f32.gmra.mrb[0].mxu0 %v1299
    %v1376 = vpop.f32.mrb[0].mxu0
    %v1377 = vadd.f32 0.0, %v1376
    %v1378 = vpop.f32.mrb[0].mxu0
    %1379 = vmatprep.mubr.f32.mxu0 0.0
    %1380 = vmatmul.mubr.f32.gmra.mrb[0].mxu0 %v1302
    %v1381 = vpop.f32.mrb[0].mxu0
    %v1382 = vadd.f32 0.0, %v1381
    %v1383 = vpop.f32.mrb[0].mxu0
    %1384 = vmatprep.mubr.f32.mxu0 0.0
    %1385 = vmatmul.mubr.f32.gmra.mrb[0].mxu0 %v1305
    %v1386 = vpop.f32.mrb[0].mxu0
    %v1387 = vadd.f32 0.0, %v1386
    %v1388 = vpop.f32.mrb[0].mxu0
    %1389 = vmatprep.mubr.f32.mxu0 0.0
    %1390 = vmatmul.mubr.f32.gmra.mrb[0].mxu0 %v1308
    %v1391 = vpop.f32.mrb[0].mxu0
    %v1392 = vadd.f32 0.0, %v1391
    %v1393 = vpop.f32.mrb[0].mxu0
    %1394 = vdwg.mxu0
    %1397 = vrot.lane.b32.xlu0 %v1387, 16
    %v1398 = vpop.permute.xlu0 %1397
    %1399 = vrot.lane.b32.xlu0 %v1392, 16
    %v1400 = vpop.permute.xlu0 %1399
    %v1403 = vsel %vm228, %v1377, %v1398
    %v1404 = vsel %vm228, %v1382, %v1400
    %v1405 = vlaneseq
    %v1406 = vshrl.u32 %v1405, 7
    %v1407 = vsub.s32 1, %v1406
    %v1408 = vrot.slane %v45, %v1407
    %1413 = vrot.lane.b32.xlu0 %v1026, 32
    %v1414 = vpop.permute.xlu0 %1413
    %1415 = vrot.lane.b32.xlu0 %v1028, 32
    %v1416 = vpop.permute.xlu0 %1415
    %1417 = vrot.lane.b32.xlu0 %v1030, 32
    %v1418 = vpop.permute.xlu0 %1417
    %1419 = vrot.lane.b32.xlu0 %v1032, 32
    %v1420 = vpop.permute.xlu0 %1419
    %v1426 = vsel %vm181, %v1403, 0
    %v1429 = vsel %vm181, %v1404, 0
    %1431 = vmatprep.subr.mxu0 0.0
    %1432 = vmatpush1.msra.mxu0 %v1414
    %1433 = vmatprep.subr.mxu0 0.0
    %1434 = vmatpush1.msra.mxu0 %v1416
    %1435 = vmatprep.subr.mxu0 0.0
    %1436 = vmatpush1.msra.mxu0 %v1418
    %1437 = vmatprep.subr.mxu0 0.0
    %1438 = vmatpush1.msra.mxu0 %v1420
    %1439 = vmatprep.subr.mxu0 0.0
    %1440 = vmatpush1.msra.mxu0 0.0
    %1441 = vmatprep.subr.mxu0 0.0
    %1442 = vmatpush1.msra.mxu0 0.0
    %1443 = vmatprep.subr.mxu0 0.0
    %1444 = vmatpush1.msra.mxu0 0.0
    %1445 = vmatprep.subr.mxu0 0.0
    %1446 = vmatpush1.msra.mxu0 0.0
    %1447 = vmatprep.subr.mxu0 0.0
    %1448 = vmatpush1.msra.mxu0 0.0
    %1449 = vmatprep.subr.mxu0 0.0
    %1450 = vmatpush1.msra.mxu0 0.0
    %1451 = vmatprep.subr.mxu0 0.0
    %1452 = vmatpush1.msra.mxu0 0.0
    %1453 = vmatprep.subr.mxu0 0.0
    %1454 = vmatpush1.msra.mxu0 0.0
    %1455 = vmatprep.subr.mxu0 0.0
    %1456 = vmatpush1.msra.mxu0 0.0
    %1457 = vmatprep.subr.mxu0 0.0
    %1458 = vmatpush1.msra.mxu0 0.0
    %1459 = vmatprep.subr.mxu0 0.0
    %1460 = vmatpush1.msra.mxu0 0.0
    %1461 = vmatprep.subr.mxu0 0.0
    %1462 = vmatpush1.msra.mxu0 0.0
    %1463 = vmatprep.subr.mxu0 0.0
    %1464 = vmatpush1.msra.mxu0 0.0
    %1465 = vmatprep.subr.mxu0 0.0
    %1466 = vmatpush1.msra.mxu0 0.0
    %1467 = vmatprep.subr.mxu0 0.0
    %1468 = vmatpush1.msra.mxu0 0.0
    %1469 = vmatprep.subr.mxu0 0.0
    %1470 = vmatpush1.msra.mxu0 0.0
    %1471 = vmatprep.subr.mxu0 0.0
    %1472 = vmatpush1.msra.mxu0 0.0
    %1473 = vmatprep.subr.mxu0 0.0
    %1474 = vmatpush1.msra.mxu0 0.0
    %1475 = vmatprep.subr.mxu0 0.0
    %1476 = vmatpush1.msra.mxu0 0.0
    %1477 = vmatprep.subr.mxu0 0.0
    %1478 = vmatpush1.msra.mxu0 0.0
    %1479 = vmatprep.subr.mxu0 0.0
    %1480 = vmatpush1.msra.mxu0 0.0
    %1481 = vmatprep.subr.mxu0 0.0
    %1482 = vmatpush1.msra.mxu0 0.0
    %1483 = vmatprep.subr.mxu0 0.0
    %1484 = vmatpush1.msra.mxu0 0.0
    %1485 = vmatprep.subr.mxu0 0.0
    %1486 = vmatpush1.msra.mxu0 0.0
    %1487 = vmatprep.subr.mxu0 0.0
    %1488 = vmatpush1.msra.mxu0 0.0
    %1489 = vmatprep.subr.mxu0 0.0
    %1490 = vmatpush1.msra.mxu0 0.0
    %1491 = vmatprep.subr.mxu0 0.0
    %1492 = vmatpush1.msra.mxu0 0.0
    %1493 = vmatprep.subr.mxu0 0.0
    %1494 = vmatpush1.msra.mxu0 0.0
    %1495 = vmatprep.mubr.f32.mxu0 0.0
    %1496 = vmatmul.mubr.f32.gmra.mrb[0].mxu0 %v1426
    %v1497 = vpop.f32.mrb[0].mxu0
    %v1498 = vadd.f32 %v1408, %v1497
    %v1499 = vpop.f32.mrb[0].mxu0
    %1500 = vmatprep.mubr.f32.mxu0 0.0
    %1501 = vmatmul.mubr.f32.gmra.mrb[0].mxu0 %v1429
    %v1502 = vpop.f32.mrb[0].mxu0
    %v1503 = vadd.f32 %v1408, %v1502
    %v1504 = vpop.f32.mrb[0].mxu0
    %1505 = vdwg.mxu0
    %v1506 = vadd.f32 %v1498, %v1023
    %v1507 = vadd.f32 %v1503, %v1024
    %v1508 = vsel %vm181, %v1506, 0.0
    %1509 = vadd.xlane.f32.xlu0 %v1508
    %v1510 = vpop.xlane.xlu0 %1509
    %v1511 = vsel %vm181, %v1507, 0.0
    %1512 = vadd.xlane.f32.xlu0 %v1511
    %v1513 = vpop.xlane.xlu0 %1512
    %v1514 = vmul.f32 %v1510, %v188
    %v1515 = vmul.f32 %v1513, %v188
    %v1516 = vsub.f32 %v1506, %v1514
    %v1517 = vsub.f32 %v1507, %v1515
    %v1518 = vmul.f32 %v1516, %v1516
    %v1519 = vmul.f32 %v1517, %v1517
    %v1520 = vsel %vm181, %v1518, 0.0
    %1521 = vadd.xlane.f32.xlu0 %v1520
    %v1522 = vpop.xlane.xlu0 %1521
    %v1523 = vsel %vm181, %v1519, 0.0
    %1524 = vadd.xlane.f32.xlu0 %v1523
    %v1525 = vpop.xlane.xlu0 %1524
    %v1526 = vmul.f32 %v1522, %v188
    %v1527 = vmul.f32 %v1525, %v188
    %v1528 = vadd.f32 %v1526, 1e-12
    %v1529 = vadd.f32 %v1527, 1e-12
    %v1530 = vrsqrt.pop %v1528
    %v1531 = vrsqrt.pop %v1529
    %v1532 = vmul.f32 %v1516, %v1530
    %v1533 = vmul.f32 %v1517, %v1531
    %v1534 = vlaneseq
    %v1535 = vshrl.u32 %v1534, 7
    %v1536 = vsub.s32 2, %v1535
    %v1537 = vrot.slane %v45, %v1536
    %v1538 = vmul.f32 %v1532, %v1537
    %v1539 = vmul.f32 %v1533, %v1537
    %v1540 = vlaneseq
    %v1541 = vshrl.u32 %v1540, 7
    %v1542 = vsub.s32 3, %v1541
    %v1543 = vrot.slane %v45, %v1542
    %v1544 = vadd.f32 %v1538, %v1543
    %v1545 = vadd.f32 %v1539, %v1543
    %v1546 = vlaneseq
    %v1547 = vshrl.u32 %v1546, 7
    %v1548 = vsub.s32 4, %v1547
    %v1549 = vrot.slane %v45, %v1548
    %v1551 = vsel %vm181, %v1544, 0
    %v1554 = vsel %vm181, %v1545, 0
    %1556 = vmatprep.subr.mxu0 0.0
    %1557 = vmatpush1.msra.mxu0 %v1027
    %1558 = vmatprep.subr.mxu0 0.0
    %1559 = vmatpush1.msra.mxu0 %v1029
    %1560 = vmatprep.subr.mxu0 0.0
    %1561 = vmatpush1.msra.mxu0 %v1031
    %1562 = vmatprep.subr.mxu0 0.0
    %1563 = vmatpush1.msra.mxu0 %v1033
    %1564 = vmatprep.subr.mxu0 0.0
    %1565 = vmatpush1.msra.mxu0 0.0
    %1566 = vmatprep.subr.mxu0 0.0
    %1567 = vmatpush1.msra.mxu0 0.0
    %1568 = vmatprep.subr.mxu0 0.0
    %1569 = vmatpush1.msra.mxu0 0.0
    %1570 = vmatprep.subr.mxu0 0.0
    %1571 = vmatpush1.msra.mxu0 0.0
    %1572 = vmatprep.subr.mxu0 0.0
    %1573 = vmatpush1.msra.mxu0 0.0
    %1574 = vmatprep.subr.mxu0 0.0
    %1575 = vmatpush1.msra.mxu0 0.0
    %1576 = vmatprep.subr.mxu0 0.0
    %1577 = vmatpush1.msra.mxu0 0.0
    %1578 = vmatprep.subr.mxu0 0.0
    %1579 = vmatpush1.msra.mxu0 0.0
    %1580 = vmatprep.subr.mxu0 0.0
    %1581 = vmatpush1.msra.mxu0 0.0
    %1582 = vmatprep.subr.mxu0 0.0
    %1583 = vmatpush1.msra.mxu0 0.0
    %1584 = vmatprep.subr.mxu0 0.0
    %1585 = vmatpush1.msra.mxu0 0.0
    %1586 = vmatprep.subr.mxu0 0.0
    %1587 = vmatpush1.msra.mxu0 0.0
    %1588 = vmatprep.subr.mxu0 0.0
    %1589 = vmatpush1.msra.mxu0 0.0
    %1590 = vmatprep.subr.mxu0 0.0
    %1591 = vmatpush1.msra.mxu0 0.0
    %1592 = vmatprep.subr.mxu0 0.0
    %1593 = vmatpush1.msra.mxu0 0.0
    %1594 = vmatprep.subr.mxu0 0.0
    %1595 = vmatpush1.msra.mxu0 0.0
    %1596 = vmatprep.subr.mxu0 0.0
    %1597 = vmatpush1.msra.mxu0 0.0
    %1598 = vmatprep.subr.mxu0 0.0
    %1599 = vmatpush1.msra.mxu0 0.0
    %1600 = vmatprep.subr.mxu0 0.0
    %1601 = vmatpush1.msra.mxu0 0.0
    %1602 = vmatprep.subr.mxu0 0.0
    %1603 = vmatpush1.msra.mxu0 0.0
    %1604 = vmatprep.subr.mxu0 0.0
    %1605 = vmatpush1.msra.mxu0 0.0
    %1606 = vmatprep.subr.mxu0 0.0
    %1607 = vmatpush1.msra.mxu0 0.0
    %1608 = vmatprep.subr.mxu0 0.0
    %1609 = vmatpush1.msra.mxu0 0.0
    %1610 = vmatprep.subr.mxu0 0.0
    %1611 = vmatpush1.msra.mxu0 0.0
    %1612 = vmatprep.subr.mxu0 0.0
    %1613 = vmatpush1.msra.mxu0 0.0
    %1614 = vmatprep.subr.mxu0 0.0
    %1615 = vmatpush1.msra.mxu0 0.0
    %1616 = vmatprep.subr.mxu0 0.0
    %1617 = vmatpush1.msra.mxu0 0.0
    %1618 = vmatprep.subr.mxu0 0.0
    %1619 = vmatpush1.msra.mxu0 0.0
    %1620 = vmatprep.mubr.f32.mxu0 0.0
    %1621 = vmatmul.mubr.f32.gmra.mrb[0].mxu0 %v1551
    %v1622 = vpop.f32.mrb[0].mxu0
    %v1623 = vadd.f32 %v1549, %v1622
    %v1624 = vpop.f32.mrb[0].mxu0
    %1625 = vmatprep.mubr.f32.mxu0 0.0
    %1626 = vmatmul.mubr.f32.gmra.mrb[0].mxu0 %v1554
    %v1627 = vpop.f32.mrb[0].mxu0
    %v1628 = vadd.f32 %v1549, %v1627
    %v1629 = vpop.f32.mrb[0].mxu0
    %1630 = vdwg.mxu0
    %v1631 = vmul.f32 %v1623, 0.5
    %v1632 = vmul.f32 %v1628, 0.5
    %v1633 = vmul.f32 %v1623, 0.044715
    %v1634 = vmul.f32 %v1628, 0.044715
    %v1635 = vmul.f32 %v1633, %v1623
    %v1636 = vmul.f32 %v1634, %v1628
    %v1637 = vmul.f32 %v1635, %v1623
    %v1638 = vmul.f32 %v1636, %v1628
    %v1639 = vadd.f32 %v1623, %v1637
    %v1640 = vadd.f32 %v1628, %v1638
    %v1641 = vmul.f32 %v1639, 0.7978846
    %v1642 = vmul.f32 %v1640, 0.7978846
    %v1643 = vtanh.pop %v1641
    %v1644 = vtanh.pop %v1642
    %v1645 = vadd.f32 %v1643, 1.0
    %v1646 = vadd.f32 %v1644, 1.0
    %v1647 = vmul.f32 %v1631, %v1645
    %v1648 = vmul.f32 %v1632, %v1646
    %v1649 = vlaneseq
    %v1650 = vshrl.u32 %v1649, 7
    %v1651 = vsub.s32 5, %v1650
    %v1652 = vrot.slane %v45, %v1651
    %1657 = vrot.lane.b32.xlu0 %v1027, 64
    %v1658 = vpop.permute.xlu0 %1657
    %1659 = vrot.lane.b32.xlu0 %v1029, 64
    %v1660 = vpop.permute.xlu0 %1659
    %1661 = vrot.lane.b32.xlu0 %v1031, 64
    %v1662 = vpop.permute.xlu0 %1661
    %1663 = vrot.lane.b32.xlu0 %v1033, 64
    %v1664 = vpop.permute.xlu0 %1663
    %v1666 = vsel %vm895, %v1647, 0
    %v1669 = vsel %vm895, %v1648, 0
    %v1671 = vsel %vm895, %v1658, 0
    %v1673 = vsel %vm895, %v1660, 0
    %v1675 = vsel %vm895, %v1662, 0
    %v1677 = vsel %vm895, %v1664, 0
    %1679 = vmatprep.subr.mxu0 0.0
    %1680 = vmatpush1.xpose.msra.mxu0 %v1671
    %1681 = vmatprep.subr.mxu0 0.0
    %1682 = vmatpush1.xpose.msra.mxu0 %v1673
    %1683 = vmatprep.subr.mxu0 0.0
    %1684 = vmatpush1.xpose.msra.mxu0 %v1675
    %1685 = vmatprep.subr.mxu0 0.0
    %1686 = vmatpush1.xpose.msra.mxu0 %v1677
    %1687 = vmatprep.subr.mxu0 0.0
    %1688 = vmatpush1.xpose.msra.mxu0 0.0
    %1689 = vmatprep.subr.mxu0 0.0
    %1690 = vmatpush1.xpose.msra.mxu0 0.0
    %1691 = vmatprep.subr.mxu0 0.0
    %1692 = vmatpush1.xpose.msra.mxu0 0.0
    %1693 = vmatprep.subr.mxu0 0.0
    %1694 = vmatpush1.xpose.msra.mxu0 0.0
    %1695 = vmatprep.subr.mxu0 0.0
    %1696 = vmatpush1.xpose.msra.mxu0 0.0
    %1697 = vmatprep.subr.mxu0 0.0
    %1698 = vmatpush1.xpose.msra.mxu0 0.0
    %1699 = vmatprep.subr.mxu0 0.0
    %1700 = vmatpush1.xpose.msra.mxu0 0.0
    %1701 = vmatprep.subr.mxu0 0.0
    %1702 = vmatpush1.xpose.msra.mxu0 0.0
    %1703 = vmatprep.subr.mxu0 0.0
    %1704 = vmatpush1.xpose.msra.mxu0 0.0
    %1705 = vmatprep.subr.mxu0 0.0
    %1706 = vmatpush1.xpose.msra.mxu0 0.0
    %1707 = vmatprep.subr.mxu0 0.0
    %1708 = vmatpush1.xpose.msra.mxu0 0.0
    %1709 = vmatprep.subr.mxu0 0.0
    %1710 = vmatpush1.xpose.msra.mxu0 0.0
    %1711 = vmatprep.subr.mxu0 0.0
    %1712 = vmatpush1.xpose.msra.mxu0 0.0
    %1713 = vmatprep.subr.mxu0 0.0
    %1714 = vmatpush1.xpose.msra.mxu0 0.0
    %1715 = vmatprep.subr.mxu0 0.0
    %1716 = vmatpush1.xpose.msra.mxu0 0.0
    %1717 = vmatprep.subr.mxu0 0.0
    %1718 = vmatpush1.xpose.msra.mxu0 0.0
    %1719 = vmatprep.subr.mxu0 0.0
    %1720 = vmatpush1.xpose.msra.mxu0 0.0
    %1721 = vmatprep.subr.mxu0 0.0
    %1722 = vmatpush1.xpose.msra.mxu0 0.0
    %1723 = vmatprep.subr.mxu0 0.0
    %1724 = vmatpush1.xpose.msra.mxu0 0.0
    %1725 = vmatprep.subr.mxu0 0.0
    %1726 = vmatpush1.xpose.msra.mxu0 0.0
    %1727 = vmatprep.subr.mxu0 0.0
    %1728 = vmatpush1.xpose.msra.mxu0 0.0
    %1729 = vmatprep.subr.mxu0 0.0
    %1730 = vmatpush1.xpose.msra.mxu0 0.0
    %1731 = vmatprep.subr.mxu0 0.0
    %1732 = vmatpush1.xpose.msra.mxu0 0.0
    %1733 = vmatprep.subr.mxu0 0.0
    %1734 = vmatpush1.xpose.msra.mxu0 0.0
    %1735 = vmatprep.subr.mxu0 0.0
    %1736 = vmatpush1.xpose.msra.mxu0 0.0
    %1737 = vmatprep.subr.mxu0 0.0
    %1738 = vmatpush1.xpose.msra.mxu0 0.0
    %1739 = vmatprep.subr.mxu0 0.0
    %1740 = vmatpush1.xpose.msra.mxu0 0.0
    %1741 = vmatprep.subr.mxu0 0.0
    %1742 = vmatpush1.xpose.msra.mxu0 0.0
    %1743 = vmatprep.mubr.f32.mxu0 0.0
    %1744 = vmatmul.mubr.f32.gmra.mrb[0].mxu0 %v1666
    %v1745 = vpop.f32.mrb[0].mxu0
    %v1746 = vadd.f32 %v1652, %v1745
    %v1747 = vpop.f32.mrb[0].mxu0
    %1748 = vmatprep.mubr.f32.mxu0 0.0
    %1749 = vmatmul.mubr.f32.gmra.mrb[0].mxu0 %v1669
    %v1750 = vpop.f32.mrb[0].mxu0
    %v1751 = vadd.f32 %v1652, %v1750
    %v1752 = vpop.f32.mrb[0].mxu0
    %1753 = vdwg.mxu0
    %v1754 = vadd.f32 %v1746, %v1544
    %v1755 = vadd.f32 %v1751, %v1545
    %v1756 = vsel %vm181, %v1754, 0.0
    %1757 = vadd.xlane.f32.xlu0 %v1756
    %v1758 = vpop.xlane.xlu0 %1757
    %v1759 = vsel %vm181, %v1755, 0.0
    %1760 = vadd.xlane.f32.xlu0 %v1759
    %v1761 = vpop.xlane.xlu0 %1760
    %v1762 = vmul.f32 %v1758, %v188
    %v1763 = vmul.f32 %v1761, %v188
    %v1764 = vsub.f32 %v1754, %v1762
    %v1765 = vsub.f32 %v1755, %v1763
    %v1766 = vmul.f32 %v1764, %v1764
    %v1767 = vmul.f32 %v1765, %v1765
    %v1768 = vsel %vm181, %v1766, 0.0
    %1769 = vadd.xlane.f32.xlu0 %v1768
    %v1770 = vpop.xlane.xlu0 %1769
    %v1771 = vsel %vm181, %v1767, 0.0
    %1772 = vadd.xlane.f32.xlu0 %v1771
    %v1773 = vpop.xlane.xlu0 %1772
    %v1774 = vmul.f32 %v1770, %v188
    %v1775 = vmul.f32 %v1773, %v188
    %v1776 = vadd.f32 %v1774, 1e-12
    %v1777 = vadd.f32 %v1775, 1e-12
    %v1778 = vrsqrt.pop %v1776
    %v1779 = vrsqrt.pop %v1777
    %v1780 = vmul.f32 %v1764, %v1778
    %v1781 = vmul.f32 %v1765, %v1779
    %v1782 = vlaneseq
    %v1783 = vshrl.u32 %v1782, 7
    %v1784 = vsub.s32 6, %v1783
    %v1785 = vrot.slane %v45, %v1784
    %v1786 = vmul.f32 %v1780, %v1785
    %v1787 = vmul.f32 %v1781, %v1785
    %v1788 = vlaneseq
    %v1789 = vshrl.u32 %v1788, 7
    %v1790 = vsub.s32 7, %v1789
    %v1791 = vrot.slane %v45, %v1790
    %v1792 = vadd.f32 %v1786, %v1791
    %v1793 = vadd.f32 %v1787, %v1791
    %s1794 = scalar_lea.vmem [#allocation2], 128
    %v1795 = vld [vmem:[%s1794] sm:$0xff]
    %v1796 = vld [vmem:[%s1794 + $0x10] sm:$0xff]
    %v1797 = vld [vmem:[%s1794 + $0x20] sm:$0xff]
    %v1798 = vld [vmem:[%s1794 + $0x30] sm:$0xff]
    %v1800 = vrot.slane %v1793, 7
    %vm1802 = vcmask 1040384
    %v1803 = vsel %vm1802, %v1792, %v1800
    %v1804 = vlaneseq
    %v1805 = vshrl.u32 %v1804, 7
    %v1806 = vsub.s32 2, %v1805
    %v1807 = vrot.slane %v46, %v1806
    %v1809 = vsel %vm181, %v1803, 0
    %1811 = vmatprep.subr.mxu0 0.0
    %1812 = vmatpush1.msra.mxu0 %v1795
    %1813 = vmatprep.subr.mxu0 0.0
    %1814 = vmatpush1.msra.mxu0 %v1796
    %1815 = vmatprep.subr.mxu0 0.0
    %1816 = vmatpush1.msra.mxu0 %v1797
    %1817 = vmatprep.subr.mxu0 0.0
    %1818 = vmatpush1.msra.mxu0 %v1798
    %1819 = vmatprep.subr.mxu0 0.0
    %1820 = vmatpush1.msra.mxu0 0.0
    %1821 = vmatprep.subr.mxu0 0.0
    %1822 = vmatpush1.msra.mxu0 0.0
    %1823 = vmatprep.subr.mxu0 0.0
    %1824 = vmatpush1.msra.mxu0 0.0
    %1825 = vmatprep.subr.mxu0 0.0
    %1826 = vmatpush1.msra.mxu0 0.0
    %1827 = vmatprep.subr.mxu0 0.0
    %1828 = vmatpush1.msra.mxu0 0.0
    %1829 = vmatprep.subr.mxu0 0.0
    %1830 = vmatpush1.msra.mxu0 0.0
    %1831 = vmatprep.subr.mxu0 0.0
    %1832 = vmatpush1.msra.mxu0 0.0
    %1833 = vmatprep.subr.mxu0 0.0
    %1834 = vmatpush1.msra.mxu0 0.0
    %1835 = vmatprep.subr.mxu0 0.0
    %1836 = vmatpush1.msra.mxu0 0.0
    %1837 = vmatprep.subr.mxu0 0.0
    %1838 = vmatpush1.msra.mxu0 0.0
    %1839 = vmatprep.subr.mxu0 0.0
    %1840 = vmatpush1.msra.mxu0 0.0
    %1841 = vmatprep.subr.mxu0 0.0
    %1842 = vmatpush1.msra.mxu0 0.0
    %1843 = vmatprep.subr.mxu0 0.0
    %1844 = vmatpush1.msra.mxu0 0.0
    %1845 = vmatprep.subr.mxu0 0.0
    %1846 = vmatpush1.msra.mxu0 0.0
    %1847 = vmatprep.subr.mxu0 0.0
    %1848 = vmatpush1.msra.mxu0 0.0
    %1849 = vmatprep.subr.mxu0 0.0
    %1850 = vmatpush1.msra.mxu0 0.0
    %1851 = vmatprep.subr.mxu0 0.0
    %1852 = vmatpush1.msra.mxu0 0.0
    %1853 = vmatprep.subr.mxu0 0.0
    %1854 = vmatpush1.msra.mxu0 0.0
    %1855 = vmatprep.subr.mxu0 0.0
    %1856 = vmatpush1.msra.mxu0 0.0
    %1857 = vmatprep.subr.mxu0 0.0
    %1858 = vmatpush1.msra.mxu0 0.0
    %1859 = vmatprep.subr.mxu0 0.0
    %1860 = vmatpush1.msra.mxu0 0.0
    %1861 = vmatprep.subr.mxu0 0.0
    %1862 = vmatpush1.msra.mxu0 0.0
    %1863 = vmatprep.subr.mxu0 0.0
    %1864 = vmatpush1.msra.mxu0 0.0
    %1865 = vmatprep.subr.mxu0 0.0
    %1866 = vmatpush1.msra.mxu0 0.0
    %1867 = vmatprep.subr.mxu0 0.0
    %1868 = vmatpush1.msra.mxu0 0.0
    %1869 = vmatprep.subr.mxu0 0.0
    %1870 = vmatpush1.msra.mxu0 0.0
    %1871 = vmatprep.subr.mxu0 0.0
    %1872 = vmatpush1.msra.mxu0 0.0
    %1873 = vmatprep.subr.mxu0 0.0
    %1874 = vmatpush1.msra.mxu0 0.0
    %1875 = vmatprep.mubr.f32.mxu0 0.0
    %1876 = vmatmul.mubr.f32.gmra.mrb[0].mxu0 %v1809
    %v1877 = vpop.f32.mrb[0].mxu0
    %v1878 = vadd.f32 %v1807, %v1877
    %v1879 = vpop.f32.mrb[0].mxu0
    %1880 = vdwg.mxu0
    %v1881 = vtanh.pop %v1878
    %v1882 = vlaneseq
    %v1883 = vshrl.u32 %v1882, 7
    %v1884 = vsub.s32 3, %v1883
    %v1885 = vrot.slane %v46, %v1884
    %1890 = vrot.lane.b32.xlu0 %v1795, 96
    %v1891 = vpop.permute.xlu0 %1890
    %1892 = vrot.lane.b32.xlu0 %v1796, 96
    %v1893 = vpop.permute.xlu0 %1892
    %1894 = vrot.lane.b32.xlu0 %v1797, 96
    %v1895 = vpop.permute.xlu0 %1894
    %1896 = vrot.lane.b32.xlu0 %v1798, 96
    %v1897 = vpop.permute.xlu0 %1896
    %v1903 = vsel %vm181, %v1881, 0
    %1905 = vmatprep.subr.mxu0 0.0
    %1906 = vmatpush1.msra.mxu0 %v1891
    %1907 = vmatprep.subr.mxu0 0.0
    %1908 = vmatpush1.msra.mxu0 %v1893
    %1909 = vmatprep.subr.mxu0 0.0
    %1910 = vmatpush1.msra.mxu0 %v1895
    %1911 = vmatprep.subr.mxu0 0.0
    %1912 = vmatpush1.msra.mxu0 %v1897
    %1913 = vmatprep.subr.mxu0 0.0
    %1914 = vmatpush1.msra.mxu0 0.0
    %1915 = vmatprep.subr.mxu0 0.0
    %1916 = vmatpush1.msra.mxu0 0.0
    %1917 = vmatprep.subr.mxu0 0.0
    %1918 = vmatpush1.msra.mxu0 0.0
    %1919 = vmatprep.subr.mxu0 0.0
    %1920 = vmatpush1.msra.mxu0 0.0
    %1921 = vmatprep.subr.mxu0 0.0
    %1922 = vmatpush1.msra.mxu0 0.0
    %1923 = vmatprep.subr.mxu0 0.0
    %1924 = vmatpush1.msra.mxu0 0.0
    %1925 = vmatprep.subr.mxu0 0.0
    %1926 = vmatpush1.msra.mxu0 0.0
    %1927 = vmatprep.subr.mxu0 0.0
    %1928 = vmatpush1.msra.mxu0 0.0
    %1929 = vmatprep.subr.mxu0 0.0
    %1930 = vmatpush1.msra.mxu0 0.0
    %1931 = vmatprep.subr.mxu0 0.0
    %1932 = vmatpush1.msra.mxu0 0.0
    %1933 = vmatprep.subr.mxu0 0.0
    %1934 = vmatpush1.msra.mxu0 0.0
    %1935 = vmatprep.subr.mxu0 0.0
    %1936 = vmatpush1.msra.mxu0 0.0
    %1937 = vmatprep.subr.mxu0 0.0
    %1938 = vmatpush1.msra.mxu0 0.0
    %1939 = vmatprep.subr.mxu0 0.0
    %1940 = vmatpush1.msra.mxu0 0.0
    %1941 = vmatprep.subr.mxu0 0.0
    %1942 = vmatpush1.msra.mxu0 0.0
    %1943 = vmatprep.subr.mxu0 0.0
    %1944 = vmatpush1.msra.mxu0 0.0
    %1945 = vmatprep.subr.mxu0 0.0
    %1946 = vmatpush1.msra.mxu0 0.0
    %1947 = vmatprep.subr.mxu0 0.0
    %1948 = vmatpush1.msra.mxu0 0.0
    %1949 = vmatprep.subr.mxu0 0.0
    %1950 = vmatpush1.msra.mxu0 0.0
    %1951 = vmatprep.subr.mxu0 0.0
    %1952 = vmatpush1.msra.mxu0 0.0
    %1953 = vmatprep.subr.mxu0 0.0
    %1954 = vmatpush1.msra.mxu0 0.0
    %1955 = vmatprep.subr.mxu0 0.0
    %1956 = vmatpush1.msra.mxu0 0.0
    %1957 = vmatprep.subr.mxu0 0.0
    %1958 = vmatpush1.msra.mxu0 0.0
    %1959 = vmatprep.subr.mxu0 0.0
    %1960 = vmatpush1.msra.mxu0 0.0
    %1961 = vmatprep.subr.mxu0 0.0
    %1962 = vmatpush1.msra.mxu0 0.0
    %1963 = vmatprep.subr.mxu0 0.0
    %1964 = vmatpush1.msra.mxu0 0.0
    %1965 = vmatprep.subr.mxu0 0.0
    %1966 = vmatpush1.msra.mxu0 0.0
    %1967 = vmatprep.subr.mxu0 0.0
    %1968 = vmatpush1.msra.mxu0 0.0
    %1969 = vmatprep.mubr.f32.mxu0 0.0
    %1970 = vmatmul.mubr.f32.gmra.mrb[0].mxu0 %v1903
    %v1971 = vpop.f32.mrb[0].mxu0
    %v1972 = vadd.f32 %v1885, %v1971
    %v1973 = vpop.f32.mrb[0].mxu0
    %1974 = vdwg.mxu0
    %vm1975 = vcmask 9216
    %1976 = vst.msk [vmem:[#allocation6] sm:$0x3] %vm1975, %v1972
    %v1977 = vld [vmem:[%s3] sm:$0x3]
    %1978 = vset.pattern.permute.xlu0 0
    %1979 = vperm.xlu0 %1978, %v1977
    %v1980 = vpop.permute.xlu0 %1979
    %vm1981 = vcmp.eq.s32.totalorder %v1980, %v52
    %v1982 = vsel %vm1981, 1, 0
    %v1983 = vcvt.s32.f32 %v1982
    %v1984 = vsel %vm1975, %v1972, -inf
    %1985 = vmax.xlane.f32.xlu0 %v1984
    %v1986 = vpop.xlane.xlu0 %1985
    %v1987 = vsub.f32 %v1972, %v1986
    %v1988 = vmul.f32 %v1987, 1.442695
    %v1989 = vpow.pop %v1988
    %v1990 = vsel %vm1975, %v1989, 0.0
    %1991 = vadd.xlane.f32.xlu0 %v1990
    %v1992 = vpop.xlane.xlu0 %1991
    %v1993 = vlog2.pop %v1992
    %v1994 = vmul.f32 %v1993, 0.6931472
    %v1995 = vadd.f32 %v1986, %v1994
    %v1996 = vmul.f32 %v1983, %v1972
    %v1997 = vsel %vm1975, %v1996, 0.0
    %1998 = vadd.xlane.f32.xlu0 %v1997
    %v1999 = vpop.xlane.xlu0 %1998
    %v2000 = vsub.f32 %v1995, %v1999
    %vm2001 = vcmask 1041408
    %v2002 = vsel %vm2001, %v2000, 0.0
    %v2003 = vrot.slane %v2002, 4
    %v2004 = vadd.f32 %v2002, %v2003
    %v2005 = vrot.slane %v2004, 2
    %v2006 = vadd.f32 %v2004, %v2005
    %v2007 = vrot.slane %v2006, 1
    %v2008 = vadd.f32 %v2006, %v2007
    %v2009 = vmul.f32 %v2008, 0.5
    %vm2010 = vcmask 0
    %2011 = vst.msk [vmem:[#allocation5] sm:$0x1] %vm2010, %v2009
    // Predicated region
    $region34: #{bert_forward.1} parent=1 // pred_check
      _
    $region35: #{bert_forward.1} parent=1 // pred_check_branch
      %2013 = sbr.rel (0) target = $region37
    $region36: #{bert_forward.1} parent=1 // pred_region
      %s2015 = ssub.s32 16, 16
      %2016 = vsyncadd [#allocation4], %s2015
      %s2018 = sshll.u32 [#allocation5], 4
      %s2019 = int_to_ptr.vmem [resolvable:$true] %s2018
      %2021 = dma.vmem_to_hbm [thread:$0]  %s2019, 16, %s7, [#allocation4]
    $region37: #{bert_forward.1} parent=1 // pred_fallthru
      _
    // Predicated region
    $region38: #{bert_forward.1} parent=1 // pred_check
      _
    $region39: #{bert_forward.1} parent=1 // pred_check_branch
      %2023 = sbr.rel (0) target = $region41
    $region40: #{bert_forward.1} parent=1 // pred_region
      %s2025 = ssub.s32 32, 32
      %2026 = vsyncadd [#allocation7], %s2025
      %s2028 = sshll.u32 [#allocation6], 4
      %s2029 = int_to_ptr.vmem [resolvable:$true] %s2028
      %2031 = dma.vmem_to_hbm [thread:$0]  %s2029, 32, %s8, [#allocation7]
    $region41: #{bert_forward.1} parent=1 // pred_fallthru
      _
    // Predicated region
    $region42: #{bert_forward.1} parent=1 // pred_check
      _
    $region43: #{bert_forward.1} parent=1 // pred_check_branch
      %2033 = sbr.rel (0) target = $region45
    $region44: #{bert_forward.1} parent=1 // pred_region
      %2034 = dma.done [#allocation4], 16
    $region45: #{bert_forward.1} parent=1 // pred_fallthru
      _
    // Predicated region
    $region46: #{bert_forward.1} parent=1 // pred_check
      _
    $region47: #{bert_forward.1} parent=1 // pred_check_branch
      %2036 = sbr.rel (0) target = $region49
    $region48: #{bert_forward.1} parent=1 // pred_region
      %2037 = dma.done [#allocation7], 32
    $region49: #{bert_forward.1} parent=1 // pred_fallthru
      _
    %2038 = vsyncpa [#allocation3], 1
    %2039 = vsyncpa [#allocation4], 1
    %2040 = vsyncpa [#allocation7], 1

</llo_original>
